<compile_context>
chip_gen: v7x
topology: tpu7x:2x2x1
jax: 0.10.0
libtpu: 0.0.40
codegen_flags: <defaults>
</compile_context>

<pallas_src>
import functools
import math

import jax
import jax.numpy as jnp
from jax.experimental import pallas as pl
from jax.experimental.pallas import tpu as pltpu


# --------------------------- kernel ---------------------------
def _mab_kernel(x_ref, y_ref,
                wq_ref, bq_ref, wk_ref, bk_ref, wv_ref, bv_ref,
                wo_ref, bo_ref,
                o_ref, *, num_heads, scale, x_shared):
    """One (batch-block, query-tile) step of a full MAB block."""
    H = num_heads
    f32 = jnp.float32
    mm = wq_ref.dtype                       # MXU operand dtype (bf16 by default)

    nb, M, dy = y_ref.shape
    n = x_ref.shape[1]
    dx = x_ref.shape[2]
    dim = wq_ref.shape[1]
    dh = dim // H

    wq = wq_ref[...]                        # (dx, dim)  mm
    wk = wk_ref[...]                        # (dy, dim)  mm
    wv = wv_ref[...]                        # (dy, dim)  mm
    wo = wo_ref[...]                        # (dim, dim) mm
    bq = bq_ref[...]                        # (1, dim)   f32
    bk = bk_ref[...]
    bv = bv_ref[...]
    bo = bo_ref[...]

    # ---- fused, lane-dense projections (single 2-D matmuls over all rows) ----
    y2d = y_ref[...].reshape(nb * M, dy).astype(mm)
    k2d = (jnp.dot(y2d, wk, preferred_element_type=f32) + bk) * scale   # scale folded into K
    v2d = jnp.dot(y2d, wv, preferred_element_type=f32) + bv             # (nb*M, dim)

    if x_shared:
        # PMA: inducing points are batch-independent -> project once, reuse.
        xq = x_ref[0].astype(mm)                                        # (n, dx)
        q2d = jnp.dot(xq, wq, preferred_element_type=f32) + bq          # (n, dim)
        q_res = jnp.broadcast_to(q2d[None], (nb, n, dim))               # residual Q
    else:
        xq = x_ref[...].reshape(nb * n, dx).astype(mm)
        q2d = jnp.dot(xq, wq, preferred_element_type=f32) + bq          # (nb*n, dim)
        q_res = q2d.reshape(nb, n, dim)

    # ---- per-head attention core, batched over the packed batch ----
    attn_heads = []
    for h in range(H):                      # static, H is small (default 4)
        lo, hi = h * dh, (h + 1) * dh
        k_h = k2d[:, lo:hi].reshape(nb, M, dh).astype(mm)
        v_h = v2d[:, lo:hi].reshape(nb, M, dh).astype(mm)
        if x_shared:
            q_h = jnp.broadcast_to(q2d[:, lo:hi][None], (nb, n, dh)).astype(mm)
        else:
            q_h = q2d[:, lo:hi].reshape(nb, n, dh).astype(mm)
        s = jnp.einsum('bnd,bmd->bnm', q_h, k_h,
                       preferred_element_type=f32)                      # (nb, n, M)
        s = s - jnp.max(s, axis=-1, keepdims=True)
        e = jnp.exp(s)                                                  # f32 softmax
        denom = jnp.sum(e, axis=-1, keepdims=True)
        pv = jnp.einsum('bnm,bmd->bnd', e.astype(mm), v_h,
                        preferred_element_type=f32)                     # (nb, n, dh)
        attn_heads.append(pv * pl.reciprocal(denom, approx=False))      # exact normalize
    attn = jnp.concatenate(attn_heads, axis=-1)                         # (nb, n, dim)

    # ---- residuals + lane-dense output projection across the whole block ----
    o3 = q_res + attn                                                   # ln1 = Identity
    o2 = o3.reshape(nb * n, dim)
    proj = jnp.dot(o2.astype(mm), wo, preferred_element_type=f32) + bo  # one big matmul
    out = o2 + jnp.maximum(proj, 0.0)                                   # ln2 = Identity
    o_ref[...] = out.reshape(nb, n, dim).astype(o_ref.dtype)


# --------------------------- block sizing helpers ---------------------------
_DEFAULT_VMEM_BUDGET = 32 * 1024 * 1024     # conservative across v5e/v6e/v7x
_VMEM_LIMIT_BYTES = 64 * 1024 * 1024        # <= physical VMEM on every generation


def _mab_vmem_bytes(block_b, block_n, M, dx, dy, dim, mm_bytes):
    """Rough per-step VMEM footprint estimate (bytes)."""
    f32 = 4
    blocks = 2 * (block_b * block_n * dx + block_b * M * dy
                  + block_b * block_n * dim) * f32            # double-buffered I/O
    weights = 2 * ((dx + 2 * dy + dim) * dim * mm_bytes + 4 * dim * f32)
    inter = (block_b * (block_n + 2 * M) * dim                # q/k/v projections (f32)
             + 2 * block_b * block_n * M                      # scores + exp (one head)
             + 3 * block_b * block_n * dim) * f32             # attn / residual / fc_o
    return blocks + weights + inter


def _divisors_desc(n, cap):
    cap = max(1, min(n, cap))
    return [c for c in range(cap, 0, -1) if n % c == 0]


def _pick_block_n(N, fits, target=512):
    """Largest divisor of N (multiple of 8, <= target) fitting the budget."""
    if N <= target and fits(N):
        return N
    cands = [c for c in _divisors_desc(N, target) if c % 8 == 0]
    for c in cands:
        if fits(c):
            return c
    return cands[-1] if cands else N


def _pick_block_b(B, fits, cap=4):
    """Pack batches (PMA), but keep >= 2 grid steps for megacore and cap at 4."""
    cap = min(cap, B // 2) if B >= 2 else 1
    for c in _divisors_desc(B, max(cap, 1)):
        if fits(c):
            return c
    return 1


# --------------------------- wrappers ---------------------------
def mab_pallas(X, Y, params, *, num_heads=4, block_n=None, block_b=None,
               mm_dtype=jnp.bfloat16, vmem_budget=_DEFAULT_VMEM_BUDGET):
    """MAB forward.  X:(B or 1, N, dx), Y:(B, M, dy) -> (B, N, dim).

    If X has leading dim 1 while Y is batched, X is treated as shared across
    the batch (PMA inducing points): it stays VMEM-resident, its Q projection
    is computed once per grid step, and several batch elements are packed per
    step to fill the MXU.
    """
    Bx, N, dx = X.shape
    B, M, dy = Y.shape
    assert Bx in (1, B), "X batch must be 1 (shared) or match Y batch"
    x_shared = (Bx == 1 and B > 1)

    wq, bq, wk, bk, wv, bv, wo, bo = params
    dim = wq.shape[1]
    assert dim % num_heads == 0, "dim must be divisible by num_heads"
    scale = 1.0 / math.sqrt(dim)            # PyTorch uses sqrt(Q.shape[-1]) = sqrt(dim)

    # Pre-cast matmul weights to the MXU operand dtype once (bf16 by default);
    # biases stay f32 (added after f32 accumulation).
    wq_c, wk_c = wq.astype(mm_dtype), wk.astype(mm_dtype)
    wv_c, wo_c = wv.astype(mm_dtype), wo.astype(mm_dtype)
    bq2 = bq.reshape(1, dim).astype(jnp.float32)
    bk2 = bk.reshape(1, dim).astype(jnp.float32)
    bv2 = bv.reshape(1, dim).astype(jnp.float32)
    bo2 = bo.reshape(1, dim).astype(jnp.float32)
    mm_bytes = jnp.dtype(mm_dtype).itemsize

    if x_shared:
        if block_n is None:
            block_n = N                      # inducing points: keep all queries
        if block_b is None:
            fits = lambda bb: _mab_vmem_bytes(bb, block_n, M, dx, dy, dim,
                                              mm_bytes) <= vmem_budget
            block_b = _pick_block_b(B, fits)
    else:
        if block_b is None:
            block_b = 1
        if block_n is None:
            fits = lambda bn: _mab_vmem_bytes(block_b, bn, M, dx, dy, dim,
                                              mm_bytes) <= vmem_budget
            block_n = _pick_block_n(N, fits)
    assert B % block_b == 0 and N % block_n == 0

    kernel = functools.partial(_mab_kernel, num_heads=num_heads, scale=scale,
                               x_shared=x_shared)

    if x_shared:
        x_block = (1, N, dx)
        x_map = lambda b, n: (0, 0, 0)       # resident across the batch grid
    else:
        x_block = (block_b, block_n, dx)
        x_map = lambda b, n: (b, n, 0)

    grid = (B // block_b, N // block_n)

    return pl.pallas_call(
        kernel,
        out_shape=jax.ShapeDtypeStruct((B, N, dim), X.dtype),
        grid_spec=pltpu.PrefetchScalarGridSpec(
            num_scalar_prefetch=0,
            grid=grid,
            in_specs=[
                pl.BlockSpec(x_block, x_map),
                pl.BlockSpec((block_b, M, dy), lambda b, n: (b, 0, 0)),
                pl.BlockSpec(wq_c.shape, lambda b, n: (0, 0)),
                pl.BlockSpec((1, dim), lambda b, n: (0, 0)),
                pl.BlockSpec(wk_c.shape, lambda b, n: (0, 0)),
                pl.BlockSpec((1, dim), lambda b, n: (0, 0)),
                pl.BlockSpec(wv_c.shape, lambda b, n: (0, 0)),
                pl.BlockSpec((1, dim), lambda b, n: (0, 0)),
                pl.BlockSpec((dim, dim), lambda b, n: (0, 0)),
                pl.BlockSpec((1, dim), lambda b, n: (0, 0)),
            ],
            out_specs=pl.BlockSpec((block_b, block_n, dim),
                                   lambda b, n: (b, n, 0)),
        ),
        compiler_params=pltpu.CompilerParams(
            dimension_semantics=("parallel", "parallel"),
            vmem_limit_bytes=_VMEM_LIMIT_BYTES),
    )(X, Y, wq_c, bq2, wk_c, bk2, wv_c, bv2, wo_c, bo2)


def isab_pallas(X, I, pma_params, mab_params, *, num_heads=4,
                mm_dtype=jnp.bfloat16):
    """ISAB forward: MAB(X, PMA(X))."""
    # PMA: H = MAB(I, X).  I is passed with batch dim 1 -> kept resident in
    # VMEM (no HBM broadcast), batch elements packed per grid step.
    Hout = mab_pallas(I[None], X, pma_params, num_heads=num_heads,
                      mm_dtype=mm_dtype)                    # (B, num_inds, dim)
    # Outer MAB(X, H): queries tiled along N.
    return mab_pallas(X, Hout, mab_params, num_heads=num_heads,
                      mm_dtype=mm_dtype)                    # (B, N, dim)


# ---------------- pure-JAX reference (for correctness check) ----------------
def _mab_ref(X, Y, params, num_heads=4):
    wq, bq, wk, bk, wv, bv, wo, bo = params
    Q = X @ wq + bq
    K = Y @ wk + bk
    V = Y @ wv + bv
    dim = Q.shape[-1]
    dh = dim // num_heads
    outs = []
    for h in range(num_heads):
        qh = Q[..., h * dh:(h + 1) * dh]
        kh = K[..., h * dh:(h + 1) * dh]
        vh = V[..., h * dh:(h + 1) * dh]
        s = jnp.einsum('bnd,bmd->bnm', qh, kh) / math.sqrt(dim)
        a = jax.nn.softmax(s, axis=-1)
        outs.append(jnp.einsum('bnm,bmd->bnd', a, vh))
    attn = jnp.concatenate(outs, axis=-1)
    O = Q + attn
    return O + jax.nn.relu(O @ wo + bo)


def _isab_ref(X, I, pma_params, mab_params, num_heads=4):
    B = X.shape[0]
    I_b = jnp.broadcast_to(I, (B,) + I.shape)
    H = _mab_ref(I_b, X, pma_params, num_heads)
    return _mab_ref(X, H, mab_params, num_heads)


# ---------------- deterministic parameter construction ----------------
def _init_linear(key, fan_in, fan_out):
    kw, kb = jax.random.split(key)
    bound = 1.0 / math.sqrt(fan_in)
    w = jax.random.uniform(kw, (fan_in, fan_out), jnp.float32, -bound, bound)
    b = jax.random.uniform(kb, (fan_out,), jnp.float32, -bound, bound)
    return w, b


def make_isab_params(key, dim_X, dim, num_inds):
    keys = jax.random.split(key, 10)
    lim = math.sqrt(6.0 / (num_inds + dim))
    I = jax.random.uniform(keys[0], (num_inds, dim), jnp.float32, -lim, lim)
    # PMA's MAB: MAB(dim, dim_X, dim)
    pma = (*_init_linear(keys[1], dim, dim),      # fc_q
           *_init_linear(keys[2], dim_X, dim),    # fc_k
           *_init_linear(keys[3], dim_X, dim),    # fc_v
           *_init_linear(keys[4], dim, dim))      # fc_o
    # outer MAB: MAB(dim_X, dim, dim)
    mab = (*_init_linear(keys[5], dim_X, dim),    # fc_q
           *_init_linear(keys[6], dim, dim),      # fc_k
           *_init_linear(keys[7], dim, dim),      # fc_v
           *_init_linear(keys[8], dim, dim))      # fc_o
    return I, pma, mab


if __name__ == "__main__":
    B, N, dim_X = 2, 8, 4
    dim, num_inds, num_heads = 32, 4, 4

    key = jax.random.PRNGKey(0)
    kx, kp = jax.random.split(key)
    X = jax.random.normal(kx, (B, N, dim_X), jnp.float32)

    I, pma_params, mab_params = make_isab_params(kp, dim_X, dim, num_inds)

    ref = _isab_ref(X, I, pma_params, mab_params, num_heads=num_heads)

    # Default path: bf16 MXU operands (pre-cast weights), f32 accumulation +
    # f32 softmax with exact normalization.
    out = isab_pallas(X, I, pma_params, mab_params, num_heads=num_heads)
    out = jax.block_until_ready(out)
    assert out.shape == (B, N, dim)
    assert bool(jnp.all(jnp.isfinite(out)))
    assert float(jnp.max(jnp.abs(out - ref))) < 0.2, "bf16 path diverged from reference"

    # f32-operand path (tighter numerics).
    out_f32 = isab_pallas(X, I, pma_params, mab_params, num_heads=num_heads,
                          mm_dtype=jnp.float32)
    out_f32 = jax.block_until_ready(out_f32)
    assert out_f32.shape == (B, N, dim)
    assert jnp.allclose(out_f32, ref, atol=2e-2, rtol=2e-2), "f32 path mismatch vs reference"

    print("KERNEL_OK")
</pallas_src>

<mosaic_0001>
module attributes {stable_mosaic.version = 11 : i64} {
  func.func @_mab_kernel(%arg0: i32, %arg1: i32, %arg2: memref<1x4x32xf32, #tpu.memory_space<vmem>>, %arg3: memref<1x8x4xf32, #tpu.memory_space<vmem>>, %arg4: memref<32x32xbf16, #tpu.memory_space<vmem>>, %arg5: memref<1x32xf32, #tpu.memory_space<vmem>>, %arg6: memref<4x32xbf16, #tpu.memory_space<vmem>>, %arg7: memref<1x32xf32, #tpu.memory_space<vmem>>, %arg8: memref<4x32xbf16, #tpu.memory_space<vmem>>, %arg9: memref<1x32xf32, #tpu.memory_space<vmem>>, %arg10: memref<32x32xbf16, #tpu.memory_space<vmem>>, %arg11: memref<1x32xf32, #tpu.memory_space<vmem>>, %arg12: memref<1x4x32xf32, #tpu.memory_space<vmem>>) attributes {dimension_semantics = [#tpu.dimension_semantics<parallel>, #tpu.dimension_semantics<parallel>], iteration_bounds = array<i64: 2, 1>, scalar_prefetch = 0 : i64, scratch_operands = 0 : i64, tpu.core_type = #tpu.core_type<tc>, window_params = [{pipeline_mode = #tpu.pipeline_mode<synchronous>, transform_indices = @transform_0, window_bounds = array<i64: 1, 4, 32>}, {transform_indices = @transform_1, window_bounds = array<i64: 1, 8, 4>}, {pipeline_mode = #tpu.pipeline_mode<synchronous>, transform_indices = @transform_2, window_bounds = array<i64: 32, 32>}, {pipeline_mode = #tpu.pipeline_mode<synchronous>, transform_indices = @transform_3, window_bounds = array<i64: 1, 32>}, {pipeline_mode = #tpu.pipeline_mode<synchronous>, transform_indices = @transform_4, window_bounds = array<i64: 4, 32>}, {pipeline_mode = #tpu.pipeline_mode<synchronous>, transform_indices = @transform_5, window_bounds = array<i64: 1, 32>}, {pipeline_mode = #tpu.pipeline_mode<synchronous>, transform_indices = @transform_6, window_bounds = array<i64: 4, 32>}, {pipeline_mode = #tpu.pipeline_mode<synchronous>, transform_indices = @transform_7, window_bounds = array<i64: 1, 32>}, {pipeline_mode = #tpu.pipeline_mode<synchronous>, transform_indices = @transform_8, window_bounds = array<i64: 32, 32>}, {pipeline_mode = #tpu.pipeline_mode<synchronous>, transform_indices = @transform_9, window_bounds = array<i64: 1, 32>}, {transform_indices = @transform_10, window_bounds = array<i64: 1, 4, 32>}]} {
    %c0 = arith.constant 0 : index
    %c0_0 = arith.constant 0 : index
    %0 = vector.load %arg4[%c0, %c0_0] : memref<32x32xbf16, #tpu.memory_space<vmem>>, vector<32x32xbf16>
    %c0_1 = arith.constant 0 : index
    %c0_2 = arith.constant 0 : index
    %1 = vector.load %arg6[%c0_1, %c0_2] : memref<4x32xbf16, #tpu.memory_space<vmem>>, vector<4x32xbf16>
    %c0_3 = arith.constant 0 : index
    %c0_4 = arith.constant 0 : index
    %2 = vector.load %arg8[%c0_3, %c0_4] : memref<4x32xbf16, #tpu.memory_space<vmem>>, vector<4x32xbf16>
    %c0_5 = arith.constant 0 : index
    %c0_6 = arith.constant 0 : index
    %3 = vector.load %arg10[%c0_5, %c0_6] : memref<32x32xbf16, #tpu.memory_space<vmem>>, vector<32x32xbf16>
    %c0_7 = arith.constant 0 : index
    %c0_8 = arith.constant 0 : index
    %4 = vector.load %arg5[%c0_7, %c0_8] : memref<1x32xf32, #tpu.memory_space<vmem>>, vector<1x32xf32>
    %c0_9 = arith.constant 0 : index
    %c0_10 = arith.constant 0 : index
    %5 = vector.load %arg7[%c0_9, %c0_10] : memref<1x32xf32, #tpu.memory_space<vmem>>, vector<1x32xf32>
    %c0_11 = arith.constant 0 : index
    %c0_12 = arith.constant 0 : index
    %6 = vector.load %arg9[%c0_11, %c0_12] : memref<1x32xf32, #tpu.memory_space<vmem>>, vector<1x32xf32>
    %c0_13 = arith.constant 0 : index
    %c0_14 = arith.constant 0 : index
    %7 = vector.load %arg11[%c0_13, %c0_14] : memref<1x32xf32, #tpu.memory_space<vmem>>, vector<1x32xf32>
    %c0_15 = arith.constant 0 : index
    %c0_16 = arith.constant 0 : index
    %c0_17 = arith.constant 0 : index
    %8 = vector.load %arg3[%c0_15, %c0_16, %c0_17] : memref<1x8x4xf32, #tpu.memory_space<vmem>>, vector<1x8x4xf32>
    %9 = vector.shape_cast %8 : vector<1x8x4xf32> to vector<8x4xf32>
    %10 = arith.truncf %9 : vector<8x4xf32> to vector<8x4xbf16>
    %cst = arith.constant dense<0.000000e+00> : vector<8x32xf32>
    %11 = tpu.matmul %10, %1, %cst {dimension_numbers = #tpu.dot_dimension_numbers<[1], [0], [0], [1], [0, 0, 1, 1], [], []>} : vector<8x4xbf16>, vector<4x32xbf16>, vector<8x32xf32> -> vector<8x32xf32>
    %12 = vector.broadcast %5 : vector<1x32xf32> to vector<8x32xf32>
    %13 = arith.addf %11, %12 : vector<8x32xf32>
    %cst_18 = arith.constant 0.176776692 : f32
    %14 = vector.broadcast %cst_18 : f32 to vector<8x32xf32>
    %15 = arith.mulf %13, %14 : vector<8x32xf32>
    %cst_19 = arith.constant dense<0.000000e+00> : vector<8x32xf32>
    %16 = tpu.matmul %10, %2, %cst_19 {dimension_numbers = #tpu.dot_dimension_numbers<[1], [0], [0], [1], [0, 0, 1, 1], [], []>} : vector<8x4xbf16>, vector<4x32xbf16>, vector<8x32xf32> -> vector<8x32xf32>
    %17 = vector.broadcast %6 : vector<1x32xf32> to vector<8x32xf32>
    %18 = arith.addf %16, %17 : vector<8x32xf32>
    %c0_20 = arith.constant 0 : index
    %c0_21 = arith.constant 0 : index
    %c0_22 = arith.constant 0 : index
    %19 = vector.load %arg2[%c0_20, %c0_21, %c0_22] : memref<1x4x32xf32, #tpu.memory_space<vmem>>, vector<1x4x32xf32>
    %20 = vector.shape_cast %19 : vector<1x4x32xf32> to vector<4x32xf32>
    %21 = arith.truncf %20 : vector<4x32xf32> to vector<4x32xbf16>
    %cst_23 = arith.constant dense<0.000000e+00> : vector<4x32xf32>
    %22 = tpu.matmul %21, %0, %cst_23 {dimension_numbers = #tpu.dot_dimension_numbers<[1], [0], [0], [1], [0, 0, 1, 1], [], []>} : vector<4x32xbf16>, vector<32x32xbf16>, vector<4x32xf32> -> vector<4x32xf32>
    %23 = vector.broadcast %4 : vector<1x32xf32> to vector<4x32xf32>
    %24 = arith.addf %22, %23 : vector<4x32xf32>
    %25 = vector.shape_cast %24 : vector<4x32xf32> to vector<1x4x32xf32>
    %26 = vector.extract_strided_slice %15 {offsets = [0, 0], sizes = [8, 8], strides = [1, 1]} : vector<8x32xf32> to vector<8x8xf32>
    %27 = vector.shape_cast %26 : vector<8x8xf32> to vector<1x8x8xf32>
    %28 = arith.truncf %27 : vector<1x8x8xf32> to vector<1x8x8xbf16>
    %29 = vector.extract_strided_slice %18 {offsets = [0, 0], sizes = [8, 8], strides = [1, 1]} : vector<8x32xf32> to vector<8x8xf32>
    %30 = vector.shape_cast %29 : vector<8x8xf32> to vector<1x8x8xf32>
    %31 = arith.truncf %30 : vector<1x8x8xf32> to vector<1x8x8xbf16>
    %32 = vector.extract_strided_slice %24 {offsets = [0, 0], sizes = [4, 8], strides = [1, 1]} : vector<4x32xf32> to vector<4x8xf32>
    %33 = vector.shape_cast %32 : vector<4x8xf32> to vector<1x4x8xf32>
    %34 = arith.truncf %33 : vector<1x4x8xf32> to vector<1x4x8xbf16>
    "tpu.trace_start"() <{level = 10 : i32, message = "bnd,bmd->bnm"}> : () -> ()
    %cst_24 = arith.constant dense<0.000000e+00> : vector<1x4x8xf32>
    %35 = tpu.matmul %34, %28, %cst_24 {dimension_numbers = #tpu.dot_dimension_numbers<[2], [2], [1], [1], [0, 0, 0, 1, 1, 1], [0], [0]>} : vector<1x4x8xbf16>, vector<1x8x8xbf16>, vector<1x4x8xf32> -> vector<1x4x8xf32>
    "tpu.trace_stop"() : () -> ()
    %cst_25 = arith.constant dense<0xFF800000> : vector<1x4xf32>
    %36 = vector.multi_reduction <maximumf>, %35, %cst_25 [2] : vector<1x4x8xf32> to vector<1x4xf32>
    %37 = vector.shape_cast %36 : vector<1x4xf32> to vector<1x4x1xf32>
    %38 = vector.broadcast %37 : vector<1x4x1xf32> to vector<1x4x8xf32>
    %39 = arith.subf %35, %38 : vector<1x4x8xf32>
    %40 = math.exp %39 : vector<1x4x8xf32>
    %cst_26 = arith.constant dense<0.000000e+00> : vector<1x4xf32>
    %41 = vector.multi_reduction <add>, %40, %cst_26 [2] : vector<1x4x8xf32> to vector<1x4xf32>
    %42 = vector.shape_cast %41 : vector<1x4xf32> to vector<1x4x1xf32>
    %43 = arith.truncf %40 : vector<1x4x8xf32> to vector<1x4x8xbf16>
    "tpu.trace_start"() <{level = 10 : i32, message = "bnm,bmd->bnd"}> : () -> ()
    %cst_27 = arith.constant dense<0.000000e+00> : vector<1x4x8xf32>
    %44 = tpu.matmul %43, %31, %cst_27 {dimension_numbers = #tpu.dot_dimension_numbers<[2], [1], [1], [2], [0, 0, 0, 1, 1, 2], [0], [0]>} : vector<1x4x8xbf16>, vector<1x8x8xbf16>, vector<1x4x8xf32> -> vector<1x4x8xf32>
    "tpu.trace_stop"() : () -> ()
    %45 = tpu.reciprocal %42 : vector<1x4x1xf32> -> vector<1x4x1xf32>
    %46 = vector.broadcast %45 : vector<1x4x1xf32> to vector<1x4x8xf32>
    %47 = arith.mulf %44, %46 : vector<1x4x8xf32>
    %48 = vector.extract_strided_slice %15 {offsets = [0, 8], sizes = [8, 8], strides = [1, 1]} : vector<8x32xf32> to vector<8x8xf32>
    %49 = vector.shape_cast %48 : vector<8x8xf32> to vector<1x8x8xf32>
    %50 = arith.truncf %49 : vector<1x8x8xf32> to vector<1x8x8xbf16>
    %51 = vector.extract_strided_slice %18 {offsets = [0, 8], sizes = [8, 8], strides = [1, 1]} : vector<8x32xf32> to vector<8x8xf32>
    %52 = vector.shape_cast %51 : vector<8x8xf32> to vector<1x8x8xf32>
    %53 = arith.truncf %52 : vector<1x8x8xf32> to vector<1x8x8xbf16>
    %54 = vector.extract_strided_slice %24 {offsets = [0, 8], sizes = [4, 8], strides = [1, 1]} : vector<4x32xf32> to vector<4x8xf32>
    %55 = vector.shape_cast %54 : vector<4x8xf32> to vector<1x4x8xf32>
    %56 = arith.truncf %55 : vector<1x4x8xf32> to vector<1x4x8xbf16>
    "tpu.trace_start"() <{level = 10 : i32, message = "bnd,bmd->bnm"}> : () -> ()
    %cst_28 = arith.constant dense<0.000000e+00> : vector<1x4x8xf32>
    %57 = tpu.matmul %56, %50, %cst_28 {dimension_numbers = #tpu.dot_dimension_numbers<[2], [2], [1], [1], [0, 0, 0, 1, 1, 1], [0], [0]>} : vector<1x4x8xbf16>, vector<1x8x8xbf16>, vector<1x4x8xf32> -> vector<1x4x8xf32>
    "tpu.trace_stop"() : () -> ()
    %cst_29 = arith.constant dense<0xFF800000> : vector<1x4xf32>
    %58 = vector.multi_reduction <maximumf>, %57, %cst_29 [2] : vector<1x4x8xf32> to vector<1x4xf32>
    %59 = vector.shape_cast %58 : vector<1x4xf32> to vector<1x4x1xf32>
    %60 = vector.broadcast %59 : vector<1x4x1xf32> to vector<1x4x8xf32>
    %61 = arith.subf %57, %60 : vector<1x4x8xf32>
    %62 = math.exp %61 : vector<1x4x8xf32>
    %cst_30 = arith.constant dense<0.000000e+00> : vector<1x4xf32>
    %63 = vector.multi_reduction <add>, %62, %cst_30 [2] : vector<1x4x8xf32> to vector<1x4xf32>
    %64 = vector.shape_cast %63 : vector<1x4xf32> to vector<1x4x1xf32>
    %65 = arith.truncf %62 : vector<1x4x8xf32> to vector<1x4x8xbf16>
    "tpu.trace_start"() <{level = 10 : i32, message = "bnm,bmd->bnd"}> : () -> ()
    %cst_31 = arith.constant dense<0.000000e+00> : vector<1x4x8xf32>
    %66 = tpu.matmul %65, %53, %cst_31 {dimension_numbers = #tpu.dot_dimension_numbers<[2], [1], [1], [2], [0, 0, 0, 1, 1, 2], [0], [0]>} : vector<1x4x8xbf16>, vector<1x8x8xbf16>, vector<1x4x8xf32> -> vector<1x4x8xf32>
    "tpu.trace_stop"() : () -> ()
    %67 = tpu.reciprocal %64 : vector<1x4x1xf32> -> vector<1x4x1xf32>
    %68 = vector.broadcast %67 : vector<1x4x1xf32> to vector<1x4x8xf32>
    %69 = arith.mulf %66, %68 : vector<1x4x8xf32>
    %70 = vector.extract_strided_slice %15 {offsets = [0, 16], sizes = [8, 8], strides = [1, 1]} : vector<8x32xf32> to vector<8x8xf32>
    %71 = vector.shape_cast %70 : vector<8x8xf32> to vector<1x8x8xf32>
    %72 = arith.truncf %71 : vector<1x8x8xf32> to vector<1x8x8xbf16>
    %73 = vector.extract_strided_slice %18 {offsets = [0, 16], sizes = [8, 8], strides = [1, 1]} : vector<8x32xf32> to vector<8x8xf32>
    %74 = vector.shape_cast %73 : vector<8x8xf32> to vector<1x8x8xf32>
    %75 = arith.truncf %74 : vector<1x8x8xf32> to vector<1x8x8xbf16>
    %76 = vector.extract_strided_slice %24 {offsets = [0, 16], sizes = [4, 8], strides = [1, 1]} : vector<4x32xf32> to vector<4x8xf32>
    %77 = vector.shape_cast %76 : vector<4x8xf32> to vector<1x4x8xf32>
    %78 = arith.truncf %77 : vector<1x4x8xf32> to vector<1x4x8xbf16>
    "tpu.trace_start"() <{level = 10 : i32, message = "bnd,bmd->bnm"}> : () -> ()
    %cst_32 = arith.constant dense<0.000000e+00> : vector<1x4x8xf32>
    %79 = tpu.matmul %78, %72, %cst_32 {dimension_numbers = #tpu.dot_dimension_numbers<[2], [2], [1], [1], [0, 0, 0, 1, 1, 1], [0], [0]>} : vector<1x4x8xbf16>, vector<1x8x8xbf16>, vector<1x4x8xf32> -> vector<1x4x8xf32>
    "tpu.trace_stop"() : () -> ()
    %cst_33 = arith.constant dense<0xFF800000> : vector<1x4xf32>
    %80 = vector.multi_reduction <maximumf>, %79, %cst_33 [2] : vector<1x4x8xf32> to vector<1x4xf32>
    %81 = vector.shape_cast %80 : vector<1x4xf32> to vector<1x4x1xf32>
    %82 = vector.broadcast %81 : vector<1x4x1xf32> to vector<1x4x8xf32>
    %83 = arith.subf %79, %82 : vector<1x4x8xf32>
    %84 = math.exp %83 : vector<1x4x8xf32>
    %cst_34 = arith.constant dense<0.000000e+00> : vector<1x4xf32>
    %85 = vector.multi_reduction <add>, %84, %cst_34 [2] : vector<1x4x8xf32> to vector<1x4xf32>
    %86 = vector.shape_cast %85 : vector<1x4xf32> to vector<1x4x1xf32>
    %87 = arith.truncf %84 : vector<1x4x8xf32> to vector<1x4x8xbf16>
    "tpu.trace_start"() <{level = 10 : i32, message = "bnm,bmd->bnd"}> : () -> ()
    %cst_35 = arith.constant dense<0.000000e+00> : vector<1x4x8xf32>
    %88 = tpu.matmul %87, %75, %cst_35 {dimension_numbers = #tpu.dot_dimension_numbers<[2], [1], [1], [2], [0, 0, 0, 1, 1, 2], [0], [0]>} : vector<1x4x8xbf16>, vector<1x8x8xbf16>, vector<1x4x8xf32> -> vector<1x4x8xf32>
    "tpu.trace_stop"() : () -> ()
    %89 = tpu.reciprocal %86 : vector<1x4x1xf32> -> vector<1x4x1xf32>
    %90 = vector.broadcast %89 : vector<1x4x1xf32> to vector<1x4x8xf32>
    %91 = arith.mulf %88, %90 : vector<1x4x8xf32>
    %92 = vector.extract_strided_slice %15 {offsets = [0, 24], sizes = [8, 8], strides = [1, 1]} : vector<8x32xf32> to vector<8x8xf32>
    %93 = vector.shape_cast %92 : vector<8x8xf32> to vector<1x8x8xf32>
    %94 = arith.truncf %93 : vector<1x8x8xf32> to vector<1x8x8xbf16>
    %95 = vector.extract_strided_slice %18 {offsets = [0, 24], sizes = [8, 8], strides = [1, 1]} : vector<8x32xf32> to vector<8x8xf32>
    %96 = vector.shape_cast %95 : vector<8x8xf32> to vector<1x8x8xf32>
    %97 = arith.truncf %96 : vector<1x8x8xf32> to vector<1x8x8xbf16>
    %98 = vector.extract_strided_slice %24 {offsets = [0, 24], sizes = [4, 8], strides = [1, 1]} : vector<4x32xf32> to vector<4x8xf32>
    %99 = vector.shape_cast %98 : vector<4x8xf32> to vector<1x4x8xf32>
    %100 = arith.truncf %99 : vector<1x4x8xf32> to vector<1x4x8xbf16>
    "tpu.trace_start"() <{level = 10 : i32, message = "bnd,bmd->bnm"}> : () -> ()
    %cst_36 = arith.constant dense<0.000000e+00> : vector<1x4x8xf32>
    %101 = tpu.matmul %100, %94, %cst_36 {dimension_numbers = #tpu.dot_dimension_numbers<[2], [2], [1], [1], [0, 0, 0, 1, 1, 1], [0], [0]>} : vector<1x4x8xbf16>, vector<1x8x8xbf16>, vector<1x4x8xf32> -> vector<1x4x8xf32>
    "tpu.trace_stop"() : () -> ()
    %cst_37 = arith.constant dense<0xFF800000> : vector<1x4xf32>
    %102 = vector.multi_reduction <maximumf>, %101, %cst_37 [2] : vector<1x4x8xf32> to vector<1x4xf32>
    %103 = vector.shape_cast %102 : vector<1x4xf32> to vector<1x4x1xf32>
    %104 = vector.broadcast %103 : vector<1x4x1xf32> to vector<1x4x8xf32>
    %105 = arith.subf %101, %104 : vector<1x4x8xf32>
    %106 = math.exp %105 : vector<1x4x8xf32>
    %cst_38 = arith.constant dense<0.000000e+00> : vector<1x4xf32>
    %107 = vector.multi_reduction <add>, %106, %cst_38 [2] : vector<1x4x8xf32> to vector<1x4xf32>
    %108 = vector.shape_cast %107 : vector<1x4xf32> to vector<1x4x1xf32>
    %109 = arith.truncf %106 : vector<1x4x8xf32> to vector<1x4x8xbf16>
    "tpu.trace_start"() <{level = 10 : i32, message = "bnm,bmd->bnd"}> : () -> ()
    %cst_39 = arith.constant dense<0.000000e+00> : vector<1x4x8xf32>
    %110 = tpu.matmul %109, %97, %cst_39 {dimension_numbers = #tpu.dot_dimension_numbers<[2], [1], [1], [2], [0, 0, 0, 1, 1, 2], [0], [0]>} : vector<1x4x8xbf16>, vector<1x8x8xbf16>, vector<1x4x8xf32> -> vector<1x4x8xf32>
    "tpu.trace_stop"() : () -> ()
    %111 = tpu.reciprocal %108 : vector<1x4x1xf32> -> vector<1x4x1xf32>
    %112 = vector.broadcast %111 : vector<1x4x1xf32> to vector<1x4x8xf32>
    %113 = arith.mulf %110, %112 : vector<1x4x8xf32>
    %114 = tpu.concatenate %47, %69, %91, %113 in 2 : vector<1x4x8xf32>, vector<1x4x8xf32>, vector<1x4x8xf32>, vector<1x4x8xf32> -> vector<1x4x32xf32>
    %115 = arith.addf %25, %114 : vector<1x4x32xf32>
    %116 = vector.shape_cast %115 : vector<1x4x32xf32> to vector<4x32xf32>
    %117 = arith.truncf %116 : vector<4x32xf32> to vector<4x32xbf16>
    %cst_40 = arith.constant dense<0.000000e+00> : vector<4x32xf32>
    %118 = tpu.matmul %117, %3, %cst_40 {dimension_numbers = #tpu.dot_dimension_numbers<[1], [0], [0], [1], [0, 0, 1, 1], [], []>} : vector<4x32xbf16>, vector<32x32xbf16>, vector<4x32xf32> -> vector<4x32xf32>
    %119 = vector.broadcast %7 : vector<1x32xf32> to vector<4x32xf32>
    %120 = arith.addf %118, %119 : vector<4x32xf32>
    %cst_41 = arith.constant 0.000000e+00 : f32
    %121 = vector.broadcast %cst_41 : f32 to vector<4x32xf32>
    %122 = arith.maximumf %120, %121 : vector<4x32xf32>
    %123 = arith.addf %116, %122 : vector<4x32xf32>
    %124 = vector.shape_cast %123 : vector<4x32xf32> to vector<1x4x32xf32>
    %c0_42 = arith.constant 0 : index
    %c0_43 = arith.constant 0 : index
    %c0_44 = arith.constant 0 : index
    %125 = vector.load %arg12[%c0_42, %c0_43, %c0_44] : memref<1x4x32xf32, #tpu.memory_space<vmem>>, vector<1x4x32xf32>
    tpu.vector_store %arg12[%c0_42, %c0_43, %c0_44], %124 {strides = array<i32>} : memref<1x4x32xf32, #tpu.memory_space<vmem>>, vector<1x4x32xf32>,
    return
  }
  func.func @transform_0(%arg0: i32, %arg1: i32) -> (i32, i32, i32) {
    %c0_i32 = arith.constant 0 : i32
    %c0_i32_0 = arith.constant 0 : i32
    %c0_i32_1 = arith.constant 0 : i32
    %c0_i32_2 = arith.constant 0 : i32
    return %c0_i32, %c0_i32_0, %c0_i32_1 : i32, i32, i32
  }
  func.func @transform_1(%arg0: i32, %arg1: i32) -> (i32, i32, i32) {
    %c0_i32 = arith.constant 0 : i32
    %c0_i32_0 = arith.constant 0 : i32
    %c0_i32_1 = arith.constant 0 : i32
    return %arg0, %c0_i32, %c0_i32_0 : i32, i32, i32
  }
  func.func @transform_2(%arg0: i32, %arg1: i32) -> (i32, i32) {
    %c0_i32 = arith.constant 0 : i32
    %c0_i32_0 = arith.constant 0 : i32
    %c0_i32_1 = arith.constant 0 : i32
    return %c0_i32, %c0_i32_0 : i32, i32
  }
  func.func @transform_3(%arg0: i32, %arg1: i32) -> (i32, i32) {
    %c0_i32 = arith.constant 0 : i32
    %c0_i32_0 = arith.constant 0 : i32
    %c0_i32_1 = arith.constant 0 : i32
    return %c0_i32, %c0_i32_0 : i32, i32
  }
  func.func @transform_4(%arg0: i32, %arg1: i32) -> (i32, i32) {
    %c0_i32 = arith.constant 0 : i32
    %c0_i32_0 = arith.constant 0 : i32
    %c0_i32_1 = arith.constant 0 : i32
    return %c0_i32, %c0_i32_0 : i32, i32
  }
  func.func @transform_5(%arg0: i32, %arg1: i32) -> (i32, i32) {
    %c0_i32 = arith.constant 0 : i32
    %c0_i32_0 = arith.constant 0 : i32
    %c0_i32_1 = arith.constant 0 : i32
    return %c0_i32, %c0_i32_0 : i32, i32
  }
  func.func @transform_6(%arg0: i32, %arg1: i32) -> (i32, i32) {
    %c0_i32 = arith.constant 0 : i32
    %c0_i32_0 = arith.constant 0 : i32
    %c0_i32_1 = arith.constant 0 : i32
    return %c0_i32, %c0_i32_0 : i32, i32
  }
  func.func @transform_7(%arg0: i32, %arg1: i32) -> (i32, i32) {
    %c0_i32 = arith.constant 0 : i32
    %c0_i32_0 = arith.constant 0 : i32
    %c0_i32_1 = arith.constant 0 : i32
    return %c0_i32, %c0_i32_0 : i32, i32
  }
  func.func @transform_8(%arg0: i32, %arg1: i32) -> (i32, i32) {
    %c0_i32 = arith.constant 0 : i32
    %c0_i32_0 = arith.constant 0 : i32
    %c0_i32_1 = arith.constant 0 : i32
    return %c0_i32, %c0_i32_0 : i32, i32
  }
  func.func @transform_9(%arg0: i32, %arg1: i32) -> (i32, i32) {
    %c0_i32 = arith.constant 0 : i32
    %c0_i32_0 = arith.constant 0 : i32
    %c0_i32_1 = arith.constant 0 : i32
    return %c0_i32, %c0_i32_0 : i32, i32
  }
  func.func @transform_10(%arg0: i32, %arg1: i32) -> (i32, i32, i32) {
    %c0_i32 = arith.constant 0 : i32
    %c0_i32_0 = arith.constant 0 : i32
    return %arg0, %arg1, %c0_i32 : i32, i32, i32
  }
}

</mosaic_0001>

<llo_original>
// kernel: tpu_custom_call.1
$region0: #{tpu_custom_call.1}
  #allocation0 [shape = 'u32[]', space=smem, size = 0x4, offset = 0x4, fixed_abs, tag = 'smem constant byte address 0x4 - core index']
  #allocation1 [shape = 'u32[144,128]{1,0:T(1,128)}', space=vmem, size = 0x12000, scoped, tag = 'internal scratch']
  %s0 = inlined_call_operand.hbm [shape: f32[1,4,32], index: 0, kind: input, shape index: {}]
  %s1 = inlined_call_operand.hbm [shape: f32[2,8,4], index: 1, kind: input, shape index: {}]
  %s2 = inlined_call_operand.hbm [shape: bf16[32,32], index: 2, kind: input, shape index: {}]
  %s3 = inlined_call_operand.hbm [shape: f32[1,32], index: 3, kind: input, shape index: {}]
  %s4 = inlined_call_operand.hbm [shape: bf16[4,32], index: 4, kind: input, shape index: {}]
  %s5 = inlined_call_operand.hbm [shape: f32[1,32], index: 5, kind: input, shape index: {}]
  %s6 = inlined_call_operand.hbm [shape: bf16[4,32], index: 6, kind: input, shape index: {}]
  %s7 = inlined_call_operand.hbm [shape: f32[1,32], index: 7, kind: input, shape index: {}]
  %s8 = inlined_call_operand.hbm [shape: bf16[32,32], index: 8, kind: input, shape index: {}]
  %s9 = inlined_call_operand.hbm [shape: f32[1,32], index: 9, kind: input, shape index: {}]
  %s10 = inlined_call_operand.hbm [shape: f32[2,4,32], index: 10, kind: output, shape index: {}]
  %s11 = sld [smem:[#allocation0]]
  $region113: #{tpu_custom_call.1} parent=0
    _
  %s13 = ssub.s32 1, %s11
  %s14 = scalar_select 0, %s13, %s11
  $region1: #{tpu_custom_call.1} parent=0
    #allocation2 [shape = 'u8[2048]{0}', space=vmem, size = 0x800, scoped, tag = 'input window, operand 0, single buffered']
    #allocation3 [shape = 's32[2]{0}', space=sflag, size = 0x8, scoped, tag = 'scoped memory for tpu_custom_call.1']
    #allocation4 [shape = 's32[2]{0}', space=sflag, size = 0x8, scoped, tag = 'scoped memory for tpu_custom_call.1']
    #allocation5 [shape = 'u8[8192]{0}', space=vmem, size = 0x2000, scoped, tag = 'input window, operand 1']
    #allocation6 [shape = 's32[2]{0}', space=sflag, size = 0x8, scoped, tag = 'scoped memory for tpu_custom_call.1']
    #allocation7 [shape = 'u8[8192]{0}', space=vmem, size = 0x2000, scoped, tag = 'input window, operand 2, single buffered']
    #allocation8 [shape = 'u8[512]{0}', space=vmem, size = 0x400, scoped, tag = 'input window, operand 3, single buffered']
    #allocation9 [shape = 's32[1]{0}', space=sflag, size = 0x4, scoped, tag = 'scoped memory for tpu_custom_call.1']
    #allocation10 [shape = 'u8[1024]{0}', space=vmem, size = 0x400, scoped, tag = 'input window, operand 4, single buffered']
    #allocation11 [shape = 'u8[512]{0}', space=vmem, size = 0x400, scoped, tag = 'input window, operand 5, single buffered']
    #allocation12 [shape = 's32[1]{0}', space=sflag, size = 0x4, scoped, tag = 'scoped memory for tpu_custom_call.1']
    #allocation13 [shape = 'u8[1024]{0}', space=vmem, size = 0x400, scoped, tag = 'input window, operand 6, single buffered']
    #allocation14 [shape = 'u8[512]{0}', space=vmem, size = 0x400, scoped, tag = 'input window, operand 7, single buffered']
    #allocation15 [shape = 's32[1]{0}', space=sflag, size = 0x4, scoped, tag = 'scoped memory for tpu_custom_call.1']
    #allocation16 [shape = 'u8[8192]{0}', space=vmem, size = 0x2000, scoped, tag = 'input window, operand 8, single buffered']
    #allocation17 [shape = 'u8[512]{0}', space=vmem, size = 0x400, scoped, tag = 'input window, operand 9, single buffered']
    #allocation18 [shape = 's32[1]{0}', space=sflag, size = 0x4, scoped, tag = 'scoped memory for tpu_custom_call.1']
    #allocation19 [shape = 'u8[4096]{0}', space=vmem, size = 0x1000, scoped, tag = 'output window, operand 0']
    %15 = vsyncpa [#allocation3], 0
    %16 = vsyncpa [#allocation6], 0
    %s17 = scalar_lea.sflag [#allocation6], 1
    %18 = vsyncpa %s17, 0
    %19 = vsyncpa [#allocation9], 0
    %20 = vsyncpa [#allocation12], 0
    %21 = vsyncpa [#allocation15], 0
    %22 = vsyncpa [#allocation18], 0
    %23 = vsyncpa [#allocation4], 0
    %s24 = scalar_lea.sflag [#allocation4], 1
    %25 = vsyncpa %s24, 0
    loop: start=0, step=1, limit=4
    $region2: #{tpu_custom_call.1} parent=1 // loop_pre_header
      _
    $region3: #{tpu_custom_call.1} parent=1 // loop_header
      %s27 = sphi 0, %s31
      %p28 = scmp.ge.s32.totalorder %s27, 4
      %s34 = sphi 0, %s46
      %s35 = sphi 0, %s42
      %s36 = sphi 0, %s34
      %s37 = sphi 0, %s35
      %s38 = sphi 0, %s36
      %s39 = sphi 0, %s37
      %s47 = sphi 0, %s47
      %s49 = sphi 0, %s47
      %s50 = sphi 0, %s49
      %s64 = sphi 0, %s50
      %s70 = sphi 0, %s72
      %s73 = sphi 0, %s70
      %s74 = sphi 0, %s73
      %s90 = sphi 0, %s74
      %s94 = sphi 0, %s94
      %s96 = sphi 0, %s94
      %s97 = sphi 0, %s96
      %s111 = sphi 0, %s97
      %s115 = sphi 0, %s115
      %s117 = sphi 0, %s115
      %s118 = sphi 0, %s117
      %s132 = sphi 0, %s118
      %s136 = sphi 0, %s136
      %s138 = sphi 0, %s136
      %s139 = sphi 0, %s138
      %s153 = sphi 0, %s139
      %s157 = sphi 0, %s157
      %s159 = sphi 0, %s157
      %s160 = sphi 0, %s159
      %s174 = sphi 0, %s160
      %s178 = sphi 0, %s178
      %s180 = sphi 0, %s178
      %s181 = sphi 0, %s180
      %s195 = sphi 0, %s181
      %s199 = sphi 0, %s199
      %s201 = sphi 0, %s199
      %s202 = sphi 0, %s201
      %s216 = sphi 0, %s202
      %s220 = sphi 0, %s220
      %s222 = sphi 0, %s220
      %s223 = sphi 0, %s222
      %s237 = sphi 0, %s223
      %s241 = sphi 0, %s241
      %s243 = sphi 0, %s241
      %s244 = sphi 0, %s243
      %s258 = sphi 0, %s244
      %s266 = sphi 0, %s268
      %s269 = sphi 0, %s266
      %s270 = sphi 0, %s269
      %s286 = sphi 0, %s270
    $region4: #{tpu_custom_call.1} parent=1 // loop_header_branch
      %30 = sbr.rel (%p28) target = $region8
    $region5: #{tpu_custom_call.1} parent=1 // loop_body
      %s32 = ssub.s32 %s27, 1
      %s33 = ssub.s32 %s27, 2
      %s40 = sadd.s32 1, %s35
      %p41 = scmp.ge.s32.totalorder %s40, 1
      %s42 = scalar_select %p41, 0, %s40
      %s43 = sadd.s32 1, %s34
      %s44 = scalar_select %p41, %s43, %s34
      %p45 = scmp.ge.s32.totalorder %s44, 2
      %s46 = scalar_select %p45, 0, %s44
      %s48 = sadd.s32 %s47, 1
      %p51 = scmp.eq.s32.totalorder %s27, 1
      %p52 = scmp.ne.s32.totalorder %s47, %s49
      %p53 = scmp.eq.s32.totalorder %s27, 0
      %p54 = por %p52, %p53
      %p55 = scmp.ne.s32.totalorder %s47, %s49
      %p56 = scmp.eq.s32.totalorder %s32, 1
      %p57 = por %p55, %p56
      %p58 = scmp.ne.s32.totalorder %s49, %s50
      %p59 = scmp.eq.s32.totalorder %s32, 0
      %p60 = por %p58, %p59
      %p61 = scmp.ne.s32.totalorder %s49, %s50
      %p62 = scmp.eq.s32.totalorder %s33, 1
      %p63 = por %p61, %p62
      %p65 = scmp.ne.s32.totalorder %s50, %s64
      %p66 = scmp.eq.s32.totalorder %s33, 0
      %p67 = por %p65, %p66
      %s68 = ssub.s32 %s34, %s46
      %p69 = scmp.eq.s32.totalorder %s68, 0
      %s71 = sadd.s32 %s70, 1
      %s72 = scalar_select %p69, %s70, %s71
      %p75 = pneg %p69
      %p76 = scmp.eq.s32.totalorder %s27, 1
      %p77 = por %p75, %p76
      %p78 = scmp.ne.s32.totalorder %s70, %s73
      %p79 = scmp.eq.s32.totalorder %s27, 0
      %p80 = por %p78, %p79
      %p81 = scmp.ne.s32.totalorder %s70, %s73
      %p82 = scmp.eq.s32.totalorder %s32, 1
      %p83 = por %p81, %p82
      %p84 = scmp.ne.s32.totalorder %s73, %s74
      %p85 = scmp.eq.s32.totalorder %s32, 0
      %p86 = por %p84, %p85
      %p87 = scmp.ne.s32.totalorder %s73, %s74
      %p88 = scmp.eq.s32.totalorder %s33, 1
      %p89 = por %p87, %p88
      %p91 = scmp.ne.s32.totalorder %s74, %s90
      %p92 = scmp.eq.s32.totalorder %s33, 0
      %p93 = por %p91, %p92
      %s95 = sadd.s32 %s94, 1
      %p98 = scmp.eq.s32.totalorder %s27, 1
      %p99 = scmp.ne.s32.totalorder %s94, %s96
      %p100 = scmp.eq.s32.totalorder %s27, 0
      %p101 = por %p99, %p100
      %p102 = scmp.ne.s32.totalorder %s94, %s96
      %p103 = scmp.eq.s32.totalorder %s32, 1
      %p104 = por %p102, %p103
      %p105 = scmp.ne.s32.totalorder %s96, %s97
      %p106 = scmp.eq.s32.totalorder %s32, 0
      %p107 = por %p105, %p106
      %p108 = scmp.ne.s32.totalorder %s96, %s97
      %p109 = scmp.eq.s32.totalorder %s33, 1
      %p110 = por %p108, %p109
      %p112 = scmp.ne.s32.totalorder %s97, %s111
      %p113 = scmp.eq.s32.totalorder %s33, 0
      %p114 = por %p112, %p113
      %s116 = sadd.s32 %s115, 1
      %p119 = scmp.eq.s32.totalorder %s27, 1
      %p120 = scmp.ne.s32.totalorder %s115, %s117
      %p121 = scmp.eq.s32.totalorder %s27, 0
      %p122 = por %p120, %p121
      %p123 = scmp.ne.s32.totalorder %s115, %s117
      %p124 = scmp.eq.s32.totalorder %s32, 1
      %p125 = por %p123, %p124
      %p126 = scmp.ne.s32.totalorder %s117, %s118
      %p127 = scmp.eq.s32.totalorder %s32, 0
      %p128 = por %p126, %p127
      %p129 = scmp.ne.s32.totalorder %s117, %s118
      %p130 = scmp.eq.s32.totalorder %s33, 1
      %p131 = por %p129, %p130
      %p133 = scmp.ne.s32.totalorder %s118, %s132
      %p134 = scmp.eq.s32.totalorder %s33, 0
      %p135 = por %p133, %p134
      %s137 = sadd.s32 %s136, 1
      %p140 = scmp.eq.s32.totalorder %s27, 1
      %p141 = scmp.ne.s32.totalorder %s136, %s138
      %p142 = scmp.eq.s32.totalorder %s27, 0
      %p143 = por %p141, %p142
      %p144 = scmp.ne.s32.totalorder %s136, %s138
      %p145 = scmp.eq.s32.totalorder %s32, 1
      %p146 = por %p144, %p145
      %p147 = scmp.ne.s32.totalorder %s138, %s139
      %p148 = scmp.eq.s32.totalorder %s32, 0
      %p149 = por %p147, %p148
      %p150 = scmp.ne.s32.totalorder %s138, %s139
      %p151 = scmp.eq.s32.totalorder %s33, 1
      %p152 = por %p150, %p151
      %p154 = scmp.ne.s32.totalorder %s139, %s153
      %p155 = scmp.eq.s32.totalorder %s33, 0
      %p156 = por %p154, %p155
      %s158 = sadd.s32 %s157, 1
      %p161 = scmp.eq.s32.totalorder %s27, 1
      %p162 = scmp.ne.s32.totalorder %s157, %s159
      %p163 = scmp.eq.s32.totalorder %s27, 0
      %p164 = por %p162, %p163
      %p165 = scmp.ne.s32.totalorder %s157, %s159
      %p166 = scmp.eq.s32.totalorder %s32, 1
      %p167 = por %p165, %p166
      %p168 = scmp.ne.s32.totalorder %s159, %s160
      %p169 = scmp.eq.s32.totalorder %s32, 0
      %p170 = por %p168, %p169
      %p171 = scmp.ne.s32.totalorder %s159, %s160
      %p172 = scmp.eq.s32.totalorder %s33, 1
      %p173 = por %p171, %p172
      %p175 = scmp.ne.s32.totalorder %s160, %s174
      %p176 = scmp.eq.s32.totalorder %s33, 0
      %p177 = por %p175, %p176
      %s179 = sadd.s32 %s178, 1
      %p182 = scmp.eq.s32.totalorder %s27, 1
      %p183 = scmp.ne.s32.totalorder %s178, %s180
      %p184 = scmp.eq.s32.totalorder %s27, 0
      %p185 = por %p183, %p184
      %p186 = scmp.ne.s32.totalorder %s178, %s180
      %p187 = scmp.eq.s32.totalorder %s32, 1
      %p188 = por %p186, %p187
      %p189 = scmp.ne.s32.totalorder %s180, %s181
      %p190 = scmp.eq.s32.totalorder %s32, 0
      %p191 = por %p189, %p190
      %p192 = scmp.ne.s32.totalorder %s180, %s181
      %p193 = scmp.eq.s32.totalorder %s33, 1
      %p194 = por %p192, %p193
      %p196 = scmp.ne.s32.totalorder %s181, %s195
      %p197 = scmp.eq.s32.totalorder %s33, 0
      %p198 = por %p196, %p197
      %s200 = sadd.s32 %s199, 1
      %p203 = scmp.eq.s32.totalorder %s27, 1
      %p204 = scmp.ne.s32.totalorder %s199, %s201
      %p205 = scmp.eq.s32.totalorder %s27, 0
      %p206 = por %p204, %p205
      %p207 = scmp.ne.s32.totalorder %s199, %s201
      %p208 = scmp.eq.s32.totalorder %s32, 1
      %p209 = por %p207, %p208
      %p210 = scmp.ne.s32.totalorder %s201, %s202
      %p211 = scmp.eq.s32.totalorder %s32, 0
      %p212 = por %p210, %p211
      %p213 = scmp.ne.s32.totalorder %s201, %s202
      %p214 = scmp.eq.s32.totalorder %s33, 1
      %p215 = por %p213, %p214
      %p217 = scmp.ne.s32.totalorder %s202, %s216
      %p218 = scmp.eq.s32.totalorder %s33, 0
      %p219 = por %p217, %p218
      %s221 = sadd.s32 %s220, 1
      %p224 = scmp.eq.s32.totalorder %s27, 1
      %p225 = scmp.ne.s32.totalorder %s220, %s222
      %p226 = scmp.eq.s32.totalorder %s27, 0
      %p227 = por %p225, %p226
      %p228 = scmp.ne.s32.totalorder %s220, %s222
      %p229 = scmp.eq.s32.totalorder %s32, 1
      %p230 = por %p228, %p229
      %p231 = scmp.ne.s32.totalorder %s222, %s223
      %p232 = scmp.eq.s32.totalorder %s32, 0
      %p233 = por %p231, %p232
      %p234 = scmp.ne.s32.totalorder %s222, %s223
      %p235 = scmp.eq.s32.totalorder %s33, 1
      %p236 = por %p234, %p235
      %p238 = scmp.ne.s32.totalorder %s223, %s237
      %p239 = scmp.eq.s32.totalorder %s33, 0
      %p240 = por %p238, %p239
      %s242 = sadd.s32 %s241, 1
      %p245 = scmp.eq.s32.totalorder %s27, 1
      %p246 = scmp.ne.s32.totalorder %s241, %s243
      %p247 = scmp.eq.s32.totalorder %s27, 0
      %p248 = por %p246, %p247
      %p249 = scmp.ne.s32.totalorder %s241, %s243
      %p250 = scmp.eq.s32.totalorder %s32, 1
      %p251 = por %p249, %p250
      %p252 = scmp.ne.s32.totalorder %s243, %s244
      %p253 = scmp.eq.s32.totalorder %s32, 0
      %p254 = por %p252, %p253
      %p255 = scmp.ne.s32.totalorder %s243, %s244
      %p256 = scmp.eq.s32.totalorder %s33, 1
      %p257 = por %p255, %p256
      %p259 = scmp.ne.s32.totalorder %s244, %s258
      %p260 = scmp.eq.s32.totalorder %s33, 0
      %p261 = por %p259, %p260
      %s262 = ssub.s32 %s34, %s46
      %s263 = ssub.s32 %s35, %s42
      %s264 = sor.u32 %s262, %s263
      %p265 = scmp.eq.s32.totalorder %s264, 0
      %s267 = sadd.s32 %s266, 1
      %s268 = scalar_select %p265, %s266, %s267
      %p271 = pneg %p265
      %p272 = scmp.eq.s32.totalorder %s27, 1
      %p273 = por %p271, %p272
      %p274 = scmp.ne.s32.totalorder %s266, %s269
      %p275 = scmp.eq.s32.totalorder %s27, 0
      %p276 = por %p274, %p275
      %p277 = scmp.ne.s32.totalorder %s266, %s269
      %p278 = scmp.eq.s32.totalorder %s32, 1
      %p279 = por %p277, %p278
      %p280 = scmp.ne.s32.totalorder %s269, %s270
      %p281 = scmp.eq.s32.totalorder %s32, 0
      %p282 = por %p280, %p281
      %p283 = scmp.ne.s32.totalorder %s269, %s270
      %p284 = scmp.eq.s32.totalorder %s33, 1
      %p285 = por %p283, %p284
      %p287 = scmp.ne.s32.totalorder %s270, %s286
      %p288 = scmp.eq.s32.totalorder %s33, 0
      %p289 = por %p287, %p288
      %p290 = scmp.le.s32.totalorder 1, %s27
      %p291 = scmp.lt.s32.totalorder %s27, 3
      %p292 = pnand %p290, %p291
      %p293 = pneg %p292
      // Predicated region
      $region9: #{tpu_custom_call.1} parent=5 // pred_check
        _
      $region10: #{tpu_custom_call.1} parent=5 // pred_check_branch
        %295 = sbr.rel (%p292) target = $region12
      $region11: #{tpu_custom_call.1} parent=5 // pred_region
        %s296 = ssub.s32 %s27, 1
        // Predicated region
        $region13: #{tpu_custom_call.1} parent=11 // pred_check
          %p297 = pneg %p60
        $region14: #{tpu_custom_call.1} parent=11 // pred_check_branch
          %299 = sbr.rel (%p297) target = $region16
        $region15: #{tpu_custom_call.1} parent=11 // pred_region
          %s301 = ssub.s32 64, 64
          %302 = vsyncadd [#allocation3], %s301
          %s304 = sshll.u32 [#allocation2], 4
          %s305 = int_to_ptr.vmem [resolvable:$true] %s304
          %307 = dma.hbm_to_vmem [thread:$0]  %s0, 64, %s305, [#allocation3]
        $region16: #{tpu_custom_call.1} parent=11 // pred_fallthru
          _
        // Predicated region
        $region17: #{tpu_custom_call.1} parent=11 // pred_check
          %p308 = pneg %p107
        $region18: #{tpu_custom_call.1} parent=11 // pred_check_branch
          %310 = sbr.rel (%p308) target = $region20
        $region19: #{tpu_custom_call.1} parent=11 // pred_region
          %s312 = ssub.s32 256, 256
          %313 = vsyncadd [#allocation6], %s312
          %s314 = sshll.u32 [#allocation7], 4
          %s315 = int_to_ptr.vmem [resolvable:$true] %s314
          %320 = dma.hbm_to_vmem [thread:$0]  %s2, 256, %s315, [#allocation6], 64, 64, 4
        $region20: #{tpu_custom_call.1} parent=11 // pred_fallthru
          _
        // Predicated region
        $region21: #{tpu_custom_call.1} parent=11 // pred_check
          %p321 = pneg %p128
        $region22: #{tpu_custom_call.1} parent=11 // pred_check_branch
          %323 = sbr.rel (%p321) target = $region24
        $region23: #{tpu_custom_call.1} parent=11 // pred_region
          %s325 = ssub.s32 16, 16
          %326 = vsyncadd [#allocation9], %s325
          %s328 = sshll.u32 [#allocation8], 4
          %s329 = int_to_ptr.vmem [resolvable:$true] %s328
          %331 = dma.hbm_to_vmem [thread:$0]  %s3, 16, %s329, [#allocation9]
        $region24: #{tpu_custom_call.1} parent=11 // pred_fallthru
          _
        // Predicated region
        $region25: #{tpu_custom_call.1} parent=11 // pred_check
          %p332 = pneg %p149
        $region26: #{tpu_custom_call.1} parent=11 // pred_check_branch
          %334 = sbr.rel (%p332) target = $region28
        $region27: #{tpu_custom_call.1} parent=11 // pred_region
          %s336 = ssub.s32 32, 32
          %337 = vsyncadd [#allocation9], %s336
          %s339 = sshll.u32 [#allocation10], 4
          %s340 = int_to_ptr.vmem [resolvable:$true] %s339
          %342 = dma.hbm_to_vmem [thread:$0]  %s4, 32, %s340, [#allocation9]
        $region28: #{tpu_custom_call.1} parent=11 // pred_fallthru
          _
        // Predicated region
        $region29: #{tpu_custom_call.1} parent=11 // pred_check
          %p343 = pneg %p170
        $region30: #{tpu_custom_call.1} parent=11 // pred_check_branch
          %345 = sbr.rel (%p343) target = $region32
        $region31: #{tpu_custom_call.1} parent=11 // pred_region
          %s347 = ssub.s32 16, 16
          %348 = vsyncadd [#allocation12], %s347
          %s350 = sshll.u32 [#allocation11], 4
          %s351 = int_to_ptr.vmem [resolvable:$true] %s350
          %353 = dma.hbm_to_vmem [thread:$0]  %s5, 16, %s351, [#allocation12]
        $region32: #{tpu_custom_call.1} parent=11 // pred_fallthru
          _
        // Predicated region
        $region33: #{tpu_custom_call.1} parent=11 // pred_check
          %p354 = pneg %p191
        $region34: #{tpu_custom_call.1} parent=11 // pred_check_branch
          %356 = sbr.rel (%p354) target = $region36
        $region35: #{tpu_custom_call.1} parent=11 // pred_region
          %s358 = ssub.s32 32, 32
          %359 = vsyncadd [#allocation12], %s358
          %s361 = sshll.u32 [#allocation13], 4
          %s362 = int_to_ptr.vmem [resolvable:$true] %s361
          %364 = dma.hbm_to_vmem [thread:$0]  %s6, 32, %s362, [#allocation12]
        $region36: #{tpu_custom_call.1} parent=11 // pred_fallthru
          _
        // Predicated region
        $region37: #{tpu_custom_call.1} parent=11 // pred_check
          %p365 = pneg %p212
        $region38: #{tpu_custom_call.1} parent=11 // pred_check_branch
          %367 = sbr.rel (%p365) target = $region40
        $region39: #{tpu_custom_call.1} parent=11 // pred_region
          %s369 = ssub.s32 16, 16
          %370 = vsyncadd [#allocation15], %s369
          %s372 = sshll.u32 [#allocation14], 4
          %s373 = int_to_ptr.vmem [resolvable:$true] %s372
          %375 = dma.hbm_to_vmem [thread:$0]  %s7, 16, %s373, [#allocation15]
        $region40: #{tpu_custom_call.1} parent=11 // pred_fallthru
          _
        // Predicated region
        $region41: #{tpu_custom_call.1} parent=11 // pred_check
          %p376 = pneg %p233
        $region42: #{tpu_custom_call.1} parent=11 // pred_check_branch
          %378 = sbr.rel (%p376) target = $region44
        $region43: #{tpu_custom_call.1} parent=11 // pred_region
          %s380 = ssub.s32 256, 256
          %381 = vsyncadd [#allocation15], %s380
          %s382 = sshll.u32 [#allocation16], 4
          %s383 = int_to_ptr.vmem [resolvable:$true] %s382
          %388 = dma.hbm_to_vmem [thread:$0]  %s8, 256, %s383, [#allocation15], 64, 64, 4
        $region44: #{tpu_custom_call.1} parent=11 // pred_fallthru
          _
        // Predicated region
        $region45: #{tpu_custom_call.1} parent=11 // pred_check
          %p389 = pneg %p254
        $region46: #{tpu_custom_call.1} parent=11 // pred_check_branch
          %391 = sbr.rel (%p389) target = $region48
        $region47: #{tpu_custom_call.1} parent=11 // pred_region
          %s393 = ssub.s32 16, 16
          %394 = vsyncadd [#allocation18], %s393
          %s396 = sshll.u32 [#allocation17], 4
          %s397 = int_to_ptr.vmem [resolvable:$true] %s396
          %399 = dma.hbm_to_vmem [thread:$0]  %s9, 16, %s397, [#allocation18]
        $region48: #{tpu_custom_call.1} parent=11 // pred_fallthru
          _
      $region12: #{tpu_custom_call.1} parent=5 // pred_fallthru
        _
      %p400 = scmp.lt.s32.totalorder %s27, 2
      // Predicated region
      $region49: #{tpu_custom_call.1} parent=5 // pred_check
        %p401 = pneg %p400
      $region50: #{tpu_custom_call.1} parent=5 // pred_check_branch
        %403 = sbr.rel (%p401) target = $region52
      $region51: #{tpu_custom_call.1} parent=5 // pred_region
        // Predicated region
        $region53: #{tpu_custom_call.1} parent=51 // pred_check
          %p404 = pneg %p80
        $region54: #{tpu_custom_call.1} parent=51 // pred_check_branch
          %406 = sbr.rel (%p404) target = $region56
        $region55: #{tpu_custom_call.1} parent=51 // pred_region
          %s407 = sand.u32 %s27, 1
          %s408 = scalar_lea.sflag [#allocation6], %s407
          %s409 = sand.u32 %s70, 1
          %s410 = smul.addr %s409, 8
          %s411 = scalar_lea.vmem [#allocation5], %s410
          %s413 = ssub.s32 128, 128
          %414 = vsyncadd %s408, %s413
          %s415 = smul.addr %s34, 128
          %s416 = scalar_lea.hbm %s1, %s415
          %s418 = sshll.u32 %s411, 4
          %s419 = int_to_ptr.vmem [resolvable:$true] %s418
          %421 = dma.hbm_to_vmem [thread:$0]  %s416, 128, %s419, %s408
        $region56: #{tpu_custom_call.1} parent=51 // pred_fallthru
          _
      $region52: #{tpu_custom_call.1} parent=5 // pred_fallthru
        _
      %p422 = scmp.le.s32.totalorder 1, %s27
      %p423 = scmp.lt.s32.totalorder %s27, 3
      %p424 = pnand %p422, %p423
      %p425 = pneg %p424
      // Predicated region
      $region57: #{tpu_custom_call.1} parent=5 // pred_check
        _
      $region58: #{tpu_custom_call.1} parent=5 // pred_check_branch
        %427 = sbr.rel (%p424) target = $region60
      $region59: #{tpu_custom_call.1} parent=5 // pred_region
        %s428 = ssub.s32 %s27, 1
        // Predicated region
        $region61: #{tpu_custom_call.1} parent=59 // pred_check
          %p429 = pneg %p60
        $region62: #{tpu_custom_call.1} parent=59 // pred_check_branch
          %431 = sbr.rel (%p429) target = $region64
        $region63: #{tpu_custom_call.1} parent=59 // pred_region
          %432 = dma.done [#allocation3], 64
        $region64: #{tpu_custom_call.1} parent=59 // pred_fallthru
          _
        %s433 = sand.u32 %s32, 1
        %s434 = scalar_lea.sflag [#allocation6], %s433
        %s435 = sand.u32 %s73, 1
        %s436 = smul.addr %s435, 8
        %s437 = scalar_lea.vmem [#allocation5], %s436
        // Predicated region
        $region65: #{tpu_custom_call.1} parent=59 // pred_check
          %p438 = pneg %p86
        $region66: #{tpu_custom_call.1} parent=59 // pred_check_branch
          %440 = sbr.rel (%p438) target = $region68
        $region67: #{tpu_custom_call.1} parent=59 // pred_region
          %441 = dma.done %s434, 128
        $region68: #{tpu_custom_call.1} parent=59 // pred_fallthru
          _
        // Predicated region
        $region69: #{tpu_custom_call.1} parent=59 // pred_check
          %p442 = pneg %p107
        $region70: #{tpu_custom_call.1} parent=59 // pred_check_branch
          %444 = sbr.rel (%p442) target = $region72
        $region71: #{tpu_custom_call.1} parent=59 // pred_region
          %445 = dma.done [#allocation6], 256
        $region72: #{tpu_custom_call.1} parent=59 // pred_fallthru
          _
        // Predicated region
        $region73: #{tpu_custom_call.1} parent=59 // pred_check
          %p446 = pneg %p128
        $region74: #{tpu_custom_call.1} parent=59 // pred_check_branch
          %448 = sbr.rel (%p446) target = $region76
        $region75: #{tpu_custom_call.1} parent=59 // pred_region
          %449 = dma.done [#allocation9], 16
        $region76: #{tpu_custom_call.1} parent=59 // pred_fallthru
          _
        // Predicated region
        $region77: #{tpu_custom_call.1} parent=59 // pred_check
          %p450 = pneg %p149
        $region78: #{tpu_custom_call.1} parent=59 // pred_check_branch
          %452 = sbr.rel (%p450) target = $region80
        $region79: #{tpu_custom_call.1} parent=59 // pred_region
          %453 = dma.done [#allocation9], 32
        $region80: #{tpu_custom_call.1} parent=59 // pred_fallthru
          _
        // Predicated region
        $region81: #{tpu_custom_call.1} parent=59 // pred_check
          %p454 = pneg %p170
        $region82: #{tpu_custom_call.1} parent=59 // pred_check_branch
          %456 = sbr.rel (%p454) target = $region84
        $region83: #{tpu_custom_call.1} parent=59 // pred_region
          %457 = dma.done [#allocation12], 16
        $region84: #{tpu_custom_call.1} parent=59 // pred_fallthru
          _
        // Predicated region
        $region85: #{tpu_custom_call.1} parent=59 // pred_check
          %p458 = pneg %p191
        $region86: #{tpu_custom_call.1} parent=59 // pred_check_branch
          %460 = sbr.rel (%p458) target = $region88
        $region87: #{tpu_custom_call.1} parent=59 // pred_region
          %461 = dma.done [#allocation12], 32
        $region88: #{tpu_custom_call.1} parent=59 // pred_fallthru
          _
        // Predicated region
        $region89: #{tpu_custom_call.1} parent=59 // pred_check
          %p462 = pneg %p212
        $region90: #{tpu_custom_call.1} parent=59 // pred_check_branch
          %464 = sbr.rel (%p462) target = $region92
        $region91: #{tpu_custom_call.1} parent=59 // pred_region
          %465 = dma.done [#allocation15], 16
        $region92: #{tpu_custom_call.1} parent=59 // pred_fallthru
          _
        // Predicated region
        $region93: #{tpu_custom_call.1} parent=59 // pred_check
          %p466 = pneg %p233
        $region94: #{tpu_custom_call.1} parent=59 // pred_check_branch
          %468 = sbr.rel (%p466) target = $region96
        $region95: #{tpu_custom_call.1} parent=59 // pred_region
          %469 = dma.done [#allocation15], 256
        $region96: #{tpu_custom_call.1} parent=59 // pred_fallthru
          _
        // Predicated region
        $region97: #{tpu_custom_call.1} parent=59 // pred_check
          %p470 = pneg %p254
        $region98: #{tpu_custom_call.1} parent=59 // pred_check_branch
          %472 = sbr.rel (%p470) target = $region100
        $region99: #{tpu_custom_call.1} parent=59 // pred_region
          %473 = dma.done [#allocation18], 16
        $region100: #{tpu_custom_call.1} parent=59 // pred_fallthru
          _
        %p474 = pneg %p60
        %p475 = pneg %p57
        %s476 = sand.u32 %s32, 1
        %s477 = scalar_lea.sflag [#allocation6], %s476
        %s478 = sand.u32 %s73, 1
        %s479 = smul.addr %s478, 8
        %s480 = scalar_lea.vmem [#allocation5], %s479
        %p481 = pneg %p86
        %p482 = pneg %p83
        %p483 = pneg %p107
        %p484 = pneg %p104
        %p485 = pneg %p128
        %p486 = pneg %p125
        %p487 = pneg %p149
        %p488 = pneg %p146
        %p489 = pneg %p170
        %p490 = pneg %p167
        %p491 = pneg %p191
        %p492 = pneg %p188
        %p493 = pneg %p212
        %p494 = pneg %p209
        %p495 = pneg %p233
        %p496 = pneg %p230
        %p497 = pneg %p254
        %p498 = pneg %p251
        %p499 = pneg %p282
        %p500 = pneg %p279
        %s501 = sand.u32 %s269, 1
        %s502 = scalar_lea.sflag [#allocation4], %s501
        %s503 = sand.u32 %s269, 1
        %s504 = smul.addr %s503, 4
        %s505 = scalar_lea.vmem [#allocation19], %s504
        %v507 = vld [vmem:[#allocation7] sm:$0xf]
        %v508 = vld [vmem:[#allocation7 + $0x4] sm:$0xf]
        %v509 = vld [vmem:[#allocation7 + $0x8] sm:$0xf]
        %v510 = vld [vmem:[#allocation7 + $0xc] sm:$0xf]
        %v511 = vld [vmem:[#allocation10] sm:$0x3]
        %v512 = vld [vmem:[#allocation13] sm:$0x3]
        %v513 = vld [vmem:[#allocation16] sm:$0xf]
        %v514 = vld [vmem:[#allocation16 + $0x4] sm:$0xf]
        %v515 = vld [vmem:[#allocation16 + $0x8] sm:$0xf]
        %v516 = vld [vmem:[#allocation16 + $0xc] sm:$0xf]
        %v517 = vld [vmem:[#allocation8] sm:$0x1]
        %v518 = vld [vmem:[#allocation11] sm:$0x1]
        %v519 = vld [vmem:[#allocation14] sm:$0x1]
        %v520 = vld [vmem:[#allocation17] sm:$0x1]
        %v521 = vld [vmem:[%s437] sm:$0xff]
        %v522 = vpack.c.bf16 %v521, %v521
        %v524 = vlaneseq
        %v525 = vshrl.u32 %v524, 7
        %v526 = vsub.s32 0, %v525
        %v527 = vrot.slane %v518, %v526
        %vm529 = vcmask 31744
        %v531 = vsel %vm529, %v522, 0
        %vm533 = vcmask 1041408
        %v535 = vsel %vm533, %v511, 0
        %537 = vmatprep.subr.bf16.mxu0 0
        %538 = vmatpush1.bf16.msra.mxu0 %v535
        %539 = vmatprep.subr.bf16.mxu0 0
        %540 = vmatpush1.bf16.msra.mxu0 0
        %541 = vmatprep.subr.bf16.mxu0 0
        %542 = vmatpush1.bf16.msra.mxu0 0
        %543 = vmatprep.subr.bf16.mxu0 0
        %544 = vmatpush1.bf16.msra.mxu0 0
        %545 = vmatprep.subr.bf16.mxu0 0
        %546 = vmatpush1.bf16.msra.mxu0 0
        %547 = vmatprep.subr.bf16.mxu0 0
        %548 = vmatpush1.bf16.msra.mxu0 0
        %549 = vmatprep.subr.bf16.mxu0 0
        %550 = vmatpush1.bf16.msra.mxu0 0
        %551 = vmatprep.subr.bf16.mxu0 0
        %552 = vmatpush1.bf16.msra.mxu0 0
        %553 = vmatprep.subr.bf16.mxu0 0
        %554 = vmatpush1.bf16.msra.mxu0 0
        %555 = vmatprep.subr.bf16.mxu0 0
        %556 = vmatpush1.bf16.msra.mxu0 0
        %557 = vmatprep.subr.bf16.mxu0 0
        %558 = vmatpush1.bf16.msra.mxu0 0
        %559 = vmatprep.subr.bf16.mxu0 0
        %560 = vmatpush1.bf16.msra.mxu0 0
        %561 = vmatprep.subr.bf16.mxu0 0
        %562 = vmatpush1.bf16.msra.mxu0 0
        %563 = vmatprep.subr.bf16.mxu0 0
        %564 = vmatpush1.bf16.msra.mxu0 0
        %565 = vmatprep.subr.bf16.mxu0 0
        %566 = vmatpush1.bf16.msra.mxu0 0
        %567 = vmatprep.subr.bf16.mxu0 0
        %568 = vmatpush1.bf16.msra.mxu0 0
        %569 = vmatprep.mubr.bf16.mxu0 0
        %570 = vmatmul.mubr.bf16.gmra.mrb[0].mxu0 %v531
        %v571 = vpop.f32.mrb[0].mxu0
        %v572 = vadd.f32 %v527, %v571
        %v573 = vpop.f32.mrb[0].mxu0
        %v574 = vpop.f32.mrb[0].mxu0
        %v575 = vpop.f32.mrb[0].mxu0
        %576 = vdwg.mxu0
        %v577 = vmul.f32 %v572, 0.17677669
        %v579 = vlaneseq
        %v580 = vshrl.u32 %v579, 7
        %v581 = vsub.s32 0, %v580
        %v582 = vrot.slane %v519, %v581
        %v585 = vsel %vm533, %v512, 0
        %587 = vmatprep.subr.bf16.mxu0 0
        %588 = vmatpush1.bf16.msra.mxu0 %v585
        %589 = vmatprep.subr.bf16.mxu0 0
        %590 = vmatpush1.bf16.msra.mxu0 0
        %591 = vmatprep.subr.bf16.mxu0 0
        %592 = vmatpush1.bf16.msra.mxu0 0
        %593 = vmatprep.subr.bf16.mxu0 0
        %594 = vmatpush1.bf16.msra.mxu0 0
        %595 = vmatprep.subr.bf16.mxu0 0
        %596 = vmatpush1.bf16.msra.mxu0 0
        %597 = vmatprep.subr.bf16.mxu0 0
        %598 = vmatpush1.bf16.msra.mxu0 0
        %599 = vmatprep.subr.bf16.mxu0 0
        %600 = vmatpush1.bf16.msra.mxu0 0
        %601 = vmatprep.subr.bf16.mxu0 0
        %602 = vmatpush1.bf16.msra.mxu0 0
        %603 = vmatprep.subr.bf16.mxu0 0
        %604 = vmatpush1.bf16.msra.mxu0 0
        %605 = vmatprep.subr.bf16.mxu0 0
        %606 = vmatpush1.bf16.msra.mxu0 0
        %607 = vmatprep.subr.bf16.mxu0 0
        %608 = vmatpush1.bf16.msra.mxu0 0
        %609 = vmatprep.subr.bf16.mxu0 0
        %610 = vmatpush1.bf16.msra.mxu0 0
        %611 = vmatprep.subr.bf16.mxu0 0
        %612 = vmatpush1.bf16.msra.mxu0 0
        %613 = vmatprep.subr.bf16.mxu0 0
        %614 = vmatpush1.bf16.msra.mxu0 0
        %615 = vmatprep.subr.bf16.mxu0 0
        %616 = vmatpush1.bf16.msra.mxu0 0
        %617 = vmatprep.subr.bf16.mxu0 0
        %618 = vmatpush1.bf16.msra.mxu0 0
        %619 = vmatprep.mubr.bf16.mxu0 0
        %620 = vmatmul.mubr.bf16.gmra.mrb[0].mxu0 %v531
        %v621 = vpop.f32.mrb[0].mxu0
        %v622 = vadd.f32 %v582, %v621
        %v623 = vpop.f32.mrb[0].mxu0
        %v624 = vpop.f32.mrb[0].mxu0
        %v625 = vpop.f32.mrb[0].mxu0
        %626 = vdwg.mxu0
        %v627 = vld [vmem:[#allocation2] sm:$0xf]
        %v628 = vpack.c.bf16 %v627, %v627
        %v630 = vlaneseq
        %v631 = vshrl.u32 %v630, 7
        %v632 = vsub.s32 0, %v631
        %v633 = vrot.slane %v517, %v632
        %v639 = vunpack.c.l.b16 %v507
        %v640 = vunpack.c.l.b16 %v508
        %v641 = vunpack.c.l.b16 %v509
        %v642 = vunpack.c.l.b16 %v510
        %v643 = vpack.c.b16 %v640, %v639
        %v644 = vpack.c.b16 %v642, %v641
        %vm647 = vcmask 261120
        %v649 = vsel %vm647, %v628, 0
        %651 = vmatprep.subr.bf16.mxu0 0
        %652 = vmatpush1.bf16.msra.mxu0 %v643
        %653 = vmatprep.subr.bf16.mxu0 0
        %654 = vmatpush1.bf16.msra.mxu0 %v644
        %655 = vmatprep.subr.bf16.mxu0 0
        %656 = vmatpush1.bf16.msra.mxu0 0
        %657 = vmatprep.subr.bf16.mxu0 0
        %658 = vmatpush1.bf16.msra.mxu0 0
        %659 = vmatprep.subr.bf16.mxu0 0
        %660 = vmatpush1.bf16.msra.mxu0 0
        %661 = vmatprep.subr.bf16.mxu0 0
        %662 = vmatpush1.bf16.msra.mxu0 0
        %663 = vmatprep.subr.bf16.mxu0 0
        %664 = vmatpush1.bf16.msra.mxu0 0
        %665 = vmatprep.subr.bf16.mxu0 0
        %666 = vmatpush1.bf16.msra.mxu0 0
        %667 = vmatprep.subr.bf16.mxu0 0
        %668 = vmatpush1.bf16.msra.mxu0 0
        %669 = vmatprep.subr.bf16.mxu0 0
        %670 = vmatpush1.bf16.msra.mxu0 0
        %671 = vmatprep.subr.bf16.mxu0 0
        %672 = vmatpush1.bf16.msra.mxu0 0
        %673 = vmatprep.subr.bf16.mxu0 0
        %674 = vmatpush1.bf16.msra.mxu0 0
        %675 = vmatprep.subr.bf16.mxu0 0
        %676 = vmatpush1.bf16.msra.mxu0 0
        %677 = vmatprep.subr.bf16.mxu0 0
        %678 = vmatpush1.bf16.msra.mxu0 0
        %679 = vmatprep.subr.bf16.mxu0 0
        %680 = vmatpush1.bf16.msra.mxu0 0
        %681 = vmatprep.subr.bf16.mxu0 0
        %682 = vmatpush1.bf16.msra.mxu0 0
        %683 = vmatprep.mubr.bf16.mxu0 0
        %684 = vmatmul.mubr.bf16.gmra.mrb[0].mxu0 %v649
        %v685 = vpop.f32.mrb[0].mxu0
        %v686 = vadd.f32 %v633, %v685
        %v687 = vpop.f32.mrb[0].mxu0
        %v688 = vpop.f32.mrb[0].mxu0
        %v689 = vpop.f32.mrb[0].mxu0
        %690 = vdwg.mxu0
        %v691 = vpack.c.bf16 %v577, %v577
        %v692 = vpack.c.bf16 %v622, %v622
        %v693 = vpack.c.bf16 %v686, %v686
        %vm694 = vcmask 64512
        %v696 = vsel %vm694, %v693, 0
        %v699 = vsel %vm694, %v691, 0
        %701 = vmatprep.subr.bf16.mxu0 0
        %702 = vmatpush1.bf16.xpose.msra.mxu0 %v699
        %703 = vmatprep.subr.bf16.mxu0 0
        %704 = vmatpush1.bf16.xpose.msra.mxu0 0
        %705 = vmatprep.subr.bf16.mxu0 0
        %706 = vmatpush1.bf16.xpose.msra.mxu0 0
        %707 = vmatprep.subr.bf16.mxu0 0
        %708 = vmatpush1.bf16.xpose.msra.mxu0 0
        %709 = vmatprep.subr.bf16.mxu0 0
        %710 = vmatpush1.bf16.xpose.msra.mxu0 0
        %711 = vmatprep.subr.bf16.mxu0 0
        %712 = vmatpush1.bf16.xpose.msra.mxu0 0
        %713 = vmatprep.subr.bf16.mxu0 0
        %714 = vmatpush1.bf16.xpose.msra.mxu0 0
        %715 = vmatprep.subr.bf16.mxu0 0
        %716 = vmatpush1.bf16.xpose.msra.mxu0 0
        %717 = vmatprep.subr.bf16.mxu0 0
        %718 = vmatpush1.bf16.xpose.msra.mxu0 0
        %719 = vmatprep.subr.bf16.mxu0 0
        %720 = vmatpush1.bf16.xpose.msra.mxu0 0
        %721 = vmatprep.subr.bf16.mxu0 0
        %722 = vmatpush1.bf16.xpose.msra.mxu0 0
        %723 = vmatprep.subr.bf16.mxu0 0
        %724 = vmatpush1.bf16.xpose.msra.mxu0 0
        %725 = vmatprep.subr.bf16.mxu0 0
        %726 = vmatpush1.bf16.xpose.msra.mxu0 0
        %727 = vmatprep.subr.bf16.mxu0 0
        %728 = vmatpush1.bf16.xpose.msra.mxu0 0
        %729 = vmatprep.subr.bf16.mxu0 0
        %730 = vmatpush1.bf16.xpose.msra.mxu0 0
        %731 = vmatprep.subr.bf16.mxu0 0
        %732 = vmatpush1.bf16.xpose.msra.mxu0 0
        %733 = vmatprep.mubr.bf16.mxu0 0
        %734 = vmatmul.mubr.bf16.gmra.mrb[0].mxu0 %v696
        %v735 = vpop.f32.mrb[0].mxu0
        %v736 = vadd.f32 0.0, %v735
        %v737 = vpop.f32.mrb[0].mxu0
        %v738 = vpop.f32.mrb[0].mxu0
        %v739 = vpop.f32.mrb[0].mxu0
        %740 = vdwg.mxu0
        %vm741 = vcmask 60416
        %v742 = vsel %vm741, %v736, -inf
        %743 = vmax.xlane.f32.xlu0 %v742
        %v744 = vpop.xlane.xlu0 %743
        %v745 = vsub.f32 %v736, %v744
        %v746 = vmul.f32 %v745, 1.442695
        %v747 = vpow.pop %v746
        %v748 = vsel %vm741, %v747, 0.0
        %749 = vadd.xlane.f32.xlu0 %v748
        %v750 = vpop.xlane.xlu0 %749
        %v751 = vpack.c.bf16 %v747, %v747
        %v753 = vsel %vm694, %v751, 0
        %vm755 = vcmask 1043456
        %v757 = vsel %vm755, %v692, 0
        %759 = vmatprep.subr.bf16.mxu0 0
        %760 = vmatpush1.bf16.msra.mxu0 %v757
        %761 = vmatprep.subr.bf16.mxu0 0
        %762 = vmatpush1.bf16.msra.mxu0 0
        %763 = vmatprep.subr.bf16.mxu0 0
        %764 = vmatpush1.bf16.msra.mxu0 0
        %765 = vmatprep.subr.bf16.mxu0 0
        %766 = vmatpush1.bf16.msra.mxu0 0
        %767 = vmatprep.subr.bf16.mxu0 0
        %768 = vmatpush1.bf16.msra.mxu0 0
        %769 = vmatprep.subr.bf16.mxu0 0
        %770 = vmatpush1.bf16.msra.mxu0 0
        %771 = vmatprep.subr.bf16.mxu0 0
        %772 = vmatpush1.bf16.msra.mxu0 0
        %773 = vmatprep.subr.bf16.mxu0 0
        %774 = vmatpush1.bf16.msra.mxu0 0
        %775 = vmatprep.subr.bf16.mxu0 0
        %776 = vmatpush1.bf16.msra.mxu0 0
        %777 = vmatprep.subr.bf16.mxu0 0
        %778 = vmatpush1.bf16.msra.mxu0 0
        %779 = vmatprep.subr.bf16.mxu0 0
        %780 = vmatpush1.bf16.msra.mxu0 0
        %781 = vmatprep.subr.bf16.mxu0 0
        %782 = vmatpush1.bf16.msra.mxu0 0
        %783 = vmatprep.subr.bf16.mxu0 0
        %784 = vmatpush1.bf16.msra.mxu0 0
        %785 = vmatprep.subr.bf16.mxu0 0
        %786 = vmatpush1.bf16.msra.mxu0 0
        %787 = vmatprep.subr.bf16.mxu0 0
        %788 = vmatpush1.bf16.msra.mxu0 0
        %789 = vmatprep.subr.bf16.mxu0 0
        %790 = vmatpush1.bf16.msra.mxu0 0
        %791 = vmatprep.mubr.bf16.mxu0 0
        %792 = vmatmul.mubr.bf16.gmra.mrb[0].mxu0 %v753
        %v793 = vpop.f32.mrb[0].mxu0
        %v794 = vadd.f32 0.0, %v793
        %v795 = vpop.f32.mrb[0].mxu0
        %v796 = vpop.f32.mrb[0].mxu0
        %v797 = vpop.f32.mrb[0].mxu0
        %798 = vdwg.mxu0
        %v799 = vrcp.pop %v750
        %v800 = vmul.f32 %v794, %v799
        %802 = vrot.lane.b32.xlu0 %v693, 120
        %v803 = vpop.permute.xlu0 %802
        %805 = vrot.lane.b32.xlu0 %v691, 120
        %v806 = vpop.permute.xlu0 %805
        %v808 = vsel %vm694, %v803, 0
        %v811 = vsel %vm694, %v806, 0
        %813 = vmatprep.subr.bf16.mxu0 0
        %814 = vmatpush1.bf16.xpose.msra.mxu0 %v811
        %815 = vmatprep.subr.bf16.mxu0 0
        %816 = vmatpush1.bf16.xpose.msra.mxu0 0
        %817 = vmatprep.subr.bf16.mxu0 0
        %818 = vmatpush1.bf16.xpose.msra.mxu0 0
        %819 = vmatprep.subr.bf16.mxu0 0
        %820 = vmatpush1.bf16.xpose.msra.mxu0 0
        %821 = vmatprep.subr.bf16.mxu0 0
        %822 = vmatpush1.bf16.xpose.msra.mxu0 0
        %823 = vmatprep.subr.bf16.mxu0 0
        %824 = vmatpush1.bf16.xpose.msra.mxu0 0
        %825 = vmatprep.subr.bf16.mxu0 0
        %826 = vmatpush1.bf16.xpose.msra.mxu0 0
        %827 = vmatprep.subr.bf16.mxu0 0
        %828 = vmatpush1.bf16.xpose.msra.mxu0 0
        %829 = vmatprep.subr.bf16.mxu0 0
        %830 = vmatpush1.bf16.xpose.msra.mxu0 0
        %831 = vmatprep.subr.bf16.mxu0 0
        %832 = vmatpush1.bf16.xpose.msra.mxu0 0
        %833 = vmatprep.subr.bf16.mxu0 0
        %834 = vmatpush1.bf16.xpose.msra.mxu0 0
        %835 = vmatprep.subr.bf16.mxu0 0
        %836 = vmatpush1.bf16.xpose.msra.mxu0 0
        %837 = vmatprep.subr.bf16.mxu0 0
        %838 = vmatpush1.bf16.xpose.msra.mxu0 0
        %839 = vmatprep.subr.bf16.mxu0 0
        %840 = vmatpush1.bf16.xpose.msra.mxu0 0
        %841 = vmatprep.subr.bf16.mxu0 0
        %842 = vmatpush1.bf16.xpose.msra.mxu0 0
        %843 = vmatprep.subr.bf16.mxu0 0
        %844 = vmatpush1.bf16.xpose.msra.mxu0 0
        %845 = vmatprep.mubr.bf16.mxu0 0
        %846 = vmatmul.mubr.bf16.gmra.mrb[0].mxu0 %v808
        %v847 = vpop.f32.mrb[0].mxu0
        %v848 = vadd.f32 0.0, %v847
        %v849 = vpop.f32.mrb[0].mxu0
        %v850 = vpop.f32.mrb[0].mxu0
        %v851 = vpop.f32.mrb[0].mxu0
        %852 = vdwg.mxu0
        %v853 = vsel %vm741, %v848, -inf
        %854 = vmax.xlane.f32.xlu0 %v853
        %v855 = vpop.xlane.xlu0 %854
        %v856 = vsub.f32 %v848, %v855
        %v857 = vmul.f32 %v856, 1.442695
        %v858 = vpow.pop %v857
        %v859 = vsel %vm741, %v858, 0.0
        %860 = vadd.xlane.f32.xlu0 %v859
        %v861 = vpop.xlane.xlu0 %860
        %v862 = vpack.c.bf16 %v858, %v858
        %864 = vrot.lane.b32.xlu0 %v692, 120
        %v865 = vpop.permute.xlu0 %864
        %v867 = vsel %vm694, %v862, 0
        %v870 = vsel %vm755, %v865, 0
        %872 = vmatprep.subr.bf16.mxu0 0
        %873 = vmatpush1.bf16.msra.mxu0 %v870
        %874 = vmatprep.subr.bf16.mxu0 0
        %875 = vmatpush1.bf16.msra.mxu0 0
        %876 = vmatprep.subr.bf16.mxu0 0
        %877 = vmatpush1.bf16.msra.mxu0 0
        %878 = vmatprep.subr.bf16.mxu0 0
        %879 = vmatpush1.bf16.msra.mxu0 0
        %880 = vmatprep.subr.bf16.mxu0 0
        %881 = vmatpush1.bf16.msra.mxu0 0
        %882 = vmatprep.subr.bf16.mxu0 0
        %883 = vmatpush1.bf16.msra.mxu0 0
        %884 = vmatprep.subr.bf16.mxu0 0
        %885 = vmatpush1.bf16.msra.mxu0 0
        %886 = vmatprep.subr.bf16.mxu0 0
        %887 = vmatpush1.bf16.msra.mxu0 0
        %888 = vmatprep.subr.bf16.mxu0 0
        %889 = vmatpush1.bf16.msra.mxu0 0
        %890 = vmatprep.subr.bf16.mxu0 0
        %891 = vmatpush1.bf16.msra.mxu0 0
        %892 = vmatprep.subr.bf16.mxu0 0
        %893 = vmatpush1.bf16.msra.mxu0 0
        %894 = vmatprep.subr.bf16.mxu0 0
        %895 = vmatpush1.bf16.msra.mxu0 0
        %896 = vmatprep.subr.bf16.mxu0 0
        %897 = vmatpush1.bf16.msra.mxu0 0
        %898 = vmatprep.subr.bf16.mxu0 0
        %899 = vmatpush1.bf16.msra.mxu0 0
        %900 = vmatprep.subr.bf16.mxu0 0
        %901 = vmatpush1.bf16.msra.mxu0 0
        %902 = vmatprep.subr.bf16.mxu0 0
        %903 = vmatpush1.bf16.msra.mxu0 0
        %904 = vmatprep.mubr.bf16.mxu0 0
        %905 = vmatmul.mubr.bf16.gmra.mrb[0].mxu0 %v867
        %v906 = vpop.f32.mrb[0].mxu0
        %v907 = vadd.f32 0.0, %v906
        %v908 = vpop.f32.mrb[0].mxu0
        %v909 = vpop.f32.mrb[0].mxu0
        %v910 = vpop.f32.mrb[0].mxu0
        %911 = vdwg.mxu0
        %v912 = vrcp.pop %v861
        %v913 = vmul.f32 %v907, %v912
        %914 = vrot.lane.b32.xlu0 %v693, 112
        %v915 = vpop.permute.xlu0 %914
        %916 = vrot.lane.b32.xlu0 %v691, 112
        %v917 = vpop.permute.xlu0 %916
        %v919 = vsel %vm694, %v915, 0
        %v922 = vsel %vm694, %v917, 0
        %924 = vmatprep.subr.bf16.mxu0 0
        %925 = vmatpush1.bf16.xpose.msra.mxu0 %v922
        %926 = vmatprep.subr.bf16.mxu0 0
        %927 = vmatpush1.bf16.xpose.msra.mxu0 0
        %928 = vmatprep.subr.bf16.mxu0 0
        %929 = vmatpush1.bf16.xpose.msra.mxu0 0
        %930 = vmatprep.subr.bf16.mxu0 0
        %931 = vmatpush1.bf16.xpose.msra.mxu0 0
        %932 = vmatprep.subr.bf16.mxu0 0
        %933 = vmatpush1.bf16.xpose.msra.mxu0 0
        %934 = vmatprep.subr.bf16.mxu0 0
        %935 = vmatpush1.bf16.xpose.msra.mxu0 0
        %936 = vmatprep.subr.bf16.mxu0 0
        %937 = vmatpush1.bf16.xpose.msra.mxu0 0
        %938 = vmatprep.subr.bf16.mxu0 0
        %939 = vmatpush1.bf16.xpose.msra.mxu0 0
        %940 = vmatprep.subr.bf16.mxu0 0
        %941 = vmatpush1.bf16.xpose.msra.mxu0 0
        %942 = vmatprep.subr.bf16.mxu0 0
        %943 = vmatpush1.bf16.xpose.msra.mxu0 0
        %944 = vmatprep.subr.bf16.mxu0 0
        %945 = vmatpush1.bf16.xpose.msra.mxu0 0
        %946 = vmatprep.subr.bf16.mxu0 0
        %947 = vmatpush1.bf16.xpose.msra.mxu0 0
        %948 = vmatprep.subr.bf16.mxu0 0
        %949 = vmatpush1.bf16.xpose.msra.mxu0 0
        %950 = vmatprep.subr.bf16.mxu0 0
        %951 = vmatpush1.bf16.xpose.msra.mxu0 0
        %952 = vmatprep.subr.bf16.mxu0 0
        %953 = vmatpush1.bf16.xpose.msra.mxu0 0
        %954 = vmatprep.subr.bf16.mxu0 0
        %955 = vmatpush1.bf16.xpose.msra.mxu0 0
        %956 = vmatprep.mubr.bf16.mxu0 0
        %957 = vmatmul.mubr.bf16.gmra.mrb[0].mxu0 %v919
        %v958 = vpop.f32.mrb[0].mxu0
        %v959 = vadd.f32 0.0, %v958
        %v960 = vpop.f32.mrb[0].mxu0
        %v961 = vpop.f32.mrb[0].mxu0
        %v962 = vpop.f32.mrb[0].mxu0
        %963 = vdwg.mxu0
        %v964 = vsel %vm741, %v959, -inf
        %965 = vmax.xlane.f32.xlu0 %v964
        %v966 = vpop.xlane.xlu0 %965
        %v967 = vsub.f32 %v959, %v966
        %v968 = vmul.f32 %v967, 1.442695
        %v969 = vpow.pop %v968
        %v970 = vsel %vm741, %v969, 0.0
        %971 = vadd.xlane.f32.xlu0 %v970
        %v972 = vpop.xlane.xlu0 %971
        %v973 = vpack.c.bf16 %v969, %v969
        %974 = vrot.lane.b32.xlu0 %v692, 112
        %v975 = vpop.permute.xlu0 %974
        %v977 = vsel %vm694, %v973, 0
        %v980 = vsel %vm755, %v975, 0
        %982 = vmatprep.subr.bf16.mxu0 0
        %983 = vmatpush1.bf16.msra.mxu0 %v980
        %984 = vmatprep.subr.bf16.mxu0 0
        %985 = vmatpush1.bf16.msra.mxu0 0
        %986 = vmatprep.subr.bf16.mxu0 0
        %987 = vmatpush1.bf16.msra.mxu0 0
        %988 = vmatprep.subr.bf16.mxu0 0
        %989 = vmatpush1.bf16.msra.mxu0 0
        %990 = vmatprep.subr.bf16.mxu0 0
        %991 = vmatpush1.bf16.msra.mxu0 0
        %992 = vmatprep.subr.bf16.mxu0 0
        %993 = vmatpush1.bf16.msra.mxu0 0
        %994 = vmatprep.subr.bf16.mxu0 0
        %995 = vmatpush1.bf16.msra.mxu0 0
        %996 = vmatprep.subr.bf16.mxu0 0
        %997 = vmatpush1.bf16.msra.mxu0 0
        %998 = vmatprep.subr.bf16.mxu0 0
        %999 = vmatpush1.bf16.msra.mxu0 0
        %1000 = vmatprep.subr.bf16.mxu0 0
        %1001 = vmatpush1.bf16.msra.mxu0 0
        %1002 = vmatprep.subr.bf16.mxu0 0
        %1003 = vmatpush1.bf16.msra.mxu0 0
        %1004 = vmatprep.subr.bf16.mxu0 0
        %1005 = vmatpush1.bf16.msra.mxu0 0
        %1006 = vmatprep.subr.bf16.mxu0 0
        %1007 = vmatpush1.bf16.msra.mxu0 0
        %1008 = vmatprep.subr.bf16.mxu0 0
        %1009 = vmatpush1.bf16.msra.mxu0 0
        %1010 = vmatprep.subr.bf16.mxu0 0
        %1011 = vmatpush1.bf16.msra.mxu0 0
        %1012 = vmatprep.subr.bf16.mxu0 0
        %1013 = vmatpush1.bf16.msra.mxu0 0
        %1014 = vmatprep.mubr.bf16.mxu0 0
        %1015 = vmatmul.mubr.bf16.gmra.mrb[0].mxu0 %v977
        %v1016 = vpop.f32.mrb[0].mxu0
        %v1017 = vadd.f32 0.0, %v1016
        %v1018 = vpop.f32.mrb[0].mxu0
        %v1019 = vpop.f32.mrb[0].mxu0
        %v1020 = vpop.f32.mrb[0].mxu0
        %1021 = vdwg.mxu0
        %v1022 = vrcp.pop %v972
        %v1023 = vmul.f32 %v1017, %v1022
        %1024 = vrot.lane.b32.xlu0 %v693, 104
        %v1025 = vpop.permute.xlu0 %1024
        %1026 = vrot.lane.b32.xlu0 %v691, 104
        %v1027 = vpop.permute.xlu0 %1026
        %v1029 = vsel %vm694, %v1025, 0
        %v1032 = vsel %vm694, %v1027, 0
        %1034 = vmatprep.subr.bf16.mxu0 0
        %1035 = vmatpush1.bf16.xpose.msra.mxu0 %v1032
        %1036 = vmatprep.subr.bf16.mxu0 0
        %1037 = vmatpush1.bf16.xpose.msra.mxu0 0
        %1038 = vmatprep.subr.bf16.mxu0 0
        %1039 = vmatpush1.bf16.xpose.msra.mxu0 0
        %1040 = vmatprep.subr.bf16.mxu0 0
        %1041 = vmatpush1.bf16.xpose.msra.mxu0 0
        %1042 = vmatprep.subr.bf16.mxu0 0
        %1043 = vmatpush1.bf16.xpose.msra.mxu0 0
        %1044 = vmatprep.subr.bf16.mxu0 0
        %1045 = vmatpush1.bf16.xpose.msra.mxu0 0
        %1046 = vmatprep.subr.bf16.mxu0 0
        %1047 = vmatpush1.bf16.xpose.msra.mxu0 0
        %1048 = vmatprep.subr.bf16.mxu0 0
        %1049 = vmatpush1.bf16.xpose.msra.mxu0 0
        %1050 = vmatprep.subr.bf16.mxu0 0
        %1051 = vmatpush1.bf16.xpose.msra.mxu0 0
        %1052 = vmatprep.subr.bf16.mxu0 0
        %1053 = vmatpush1.bf16.xpose.msra.mxu0 0
        %1054 = vmatprep.subr.bf16.mxu0 0
        %1055 = vmatpush1.bf16.xpose.msra.mxu0 0
        %1056 = vmatprep.subr.bf16.mxu0 0
        %1057 = vmatpush1.bf16.xpose.msra.mxu0 0
        %1058 = vmatprep.subr.bf16.mxu0 0
        %1059 = vmatpush1.bf16.xpose.msra.mxu0 0
        %1060 = vmatprep.subr.bf16.mxu0 0
        %1061 = vmatpush1.bf16.xpose.msra.mxu0 0
        %1062 = vmatprep.subr.bf16.mxu0 0
        %1063 = vmatpush1.bf16.xpose.msra.mxu0 0
        %1064 = vmatprep.subr.bf16.mxu0 0
        %1065 = vmatpush1.bf16.xpose.msra.mxu0 0
        %1066 = vmatprep.mubr.bf16.mxu0 0
        %1067 = vmatmul.mubr.bf16.gmra.mrb[0].mxu0 %v1029
        %v1068 = vpop.f32.mrb[0].mxu0
        %v1069 = vadd.f32 0.0, %v1068
        %v1070 = vpop.f32.mrb[0].mxu0
        %v1071 = vpop.f32.mrb[0].mxu0
        %v1072 = vpop.f32.mrb[0].mxu0
        %1073 = vdwg.mxu0
        %v1074 = vsel %vm741, %v1069, -inf
        %1075 = vmax.xlane.f32.xlu0 %v1074
        %v1076 = vpop.xlane.xlu0 %1075
        %v1077 = vsub.f32 %v1069, %v1076
        %v1078 = vmul.f32 %v1077, 1.442695
        %v1079 = vpow.pop %v1078
        %v1080 = vsel %vm741, %v1079, 0.0
        %1081 = vadd.xlane.f32.xlu0 %v1080
        %v1082 = vpop.xlane.xlu0 %1081
        %v1083 = vpack.c.bf16 %v1079, %v1079
        %1084 = vrot.lane.b32.xlu0 %v692, 104
        %v1085 = vpop.permute.xlu0 %1084
        %v1087 = vsel %vm694, %v1083, 0
        %v1090 = vsel %vm755, %v1085, 0
        %1092 = vmatprep.subr.bf16.mxu0 0
        %1093 = vmatpush1.bf16.msra.mxu0 %v1090
        %1094 = vmatprep.subr.bf16.mxu0 0
        %1095 = vmatpush1.bf16.msra.mxu0 0
        %1096 = vmatprep.subr.bf16.mxu0 0
        %1097 = vmatpush1.bf16.msra.mxu0 0
        %1098 = vmatprep.subr.bf16.mxu0 0
        %1099 = vmatpush1.bf16.msra.mxu0 0
        %1100 = vmatprep.subr.bf16.mxu0 0
        %1101 = vmatpush1.bf16.msra.mxu0 0
        %1102 = vmatprep.subr.bf16.mxu0 0
        %1103 = vmatpush1.bf16.msra.mxu0 0
        %1104 = vmatprep.subr.bf16.mxu0 0
        %1105 = vmatpush1.bf16.msra.mxu0 0
        %1106 = vmatprep.subr.bf16.mxu0 0
        %1107 = vmatpush1.bf16.msra.mxu0 0
        %1108 = vmatprep.subr.bf16.mxu0 0
        %1109 = vmatpush1.bf16.msra.mxu0 0
        %1110 = vmatprep.subr.bf16.mxu0 0
        %1111 = vmatpush1.bf16.msra.mxu0 0
        %1112 = vmatprep.subr.bf16.mxu0 0
        %1113 = vmatpush1.bf16.msra.mxu0 0
        %1114 = vmatprep.subr.bf16.mxu0 0
        %1115 = vmatpush1.bf16.msra.mxu0 0
        %1116 = vmatprep.subr.bf16.mxu0 0
        %1117 = vmatpush1.bf16.msra.mxu0 0
        %1118 = vmatprep.subr.bf16.mxu0 0
        %1119 = vmatpush1.bf16.msra.mxu0 0
        %1120 = vmatprep.subr.bf16.mxu0 0
        %1121 = vmatpush1.bf16.msra.mxu0 0
        %1122 = vmatprep.subr.bf16.mxu0 0
        %1123 = vmatpush1.bf16.msra.mxu0 0
        %1124 = vmatprep.mubr.bf16.mxu0 0
        %1125 = vmatmul.mubr.bf16.gmra.mrb[0].mxu0 %v1087
        %v1126 = vpop.f32.mrb[0].mxu0
        %v1127 = vadd.f32 0.0, %v1126
        %v1128 = vpop.f32.mrb[0].mxu0
        %v1129 = vpop.f32.mrb[0].mxu0
        %v1130 = vpop.f32.mrb[0].mxu0
        %1131 = vdwg.mxu0
        %v1132 = vrcp.pop %v1082
        %v1133 = vmul.f32 %v1127, %v1132
        %1135 = vrot.lane.b32.xlu0 %v913, 8
        %v1136 = vpop.permute.xlu0 %1135
        %1139 = vrot.lane.b32.xlu0 %v1023, 16
        %v1140 = vpop.permute.xlu0 %1139
        %1143 = vrot.lane.b32.xlu0 %v1133, 24
        %v1144 = vpop.permute.xlu0 %1143
        %v1146 = vsel %vm694, %v800, %v1136
        %vm1147 = vcmask 130048
        %v1148 = vsel %vm1147, %v1146, %v1140
        %vm1149 = vcmask 195584
        %v1150 = vsel %vm1149, %v1148, %v1144
        %v1151 = vadd.f32 %v686, %v1150
        %v1152 = vpack.c.bf16 %v1151, %v1151
        %v1154 = vlaneseq
        %v1155 = vshrl.u32 %v1154, 7
        %v1156 = vsub.s32 0, %v1155
        %v1157 = vrot.slane %v520, %v1156
        %v1163 = vunpack.c.l.b16 %v513
        %v1164 = vunpack.c.l.b16 %v514
        %v1165 = vunpack.c.l.b16 %v515
        %v1166 = vunpack.c.l.b16 %v516
        %v1167 = vpack.c.b16 %v1164, %v1163
        %v1168 = vpack.c.b16 %v1166, %v1165
        %v1172 = vsel %vm647, %v1152, 0
        %1174 = vmatprep.subr.bf16.mxu0 0
        %1175 = vmatpush1.bf16.msra.mxu0 %v1167
        %1176 = vmatprep.subr.bf16.mxu0 0
        %1177 = vmatpush1.bf16.msra.mxu0 %v1168
        %1178 = vmatprep.subr.bf16.mxu0 0
        %1179 = vmatpush1.bf16.msra.mxu0 0
        %1180 = vmatprep.subr.bf16.mxu0 0
        %1181 = vmatpush1.bf16.msra.mxu0 0
        %1182 = vmatprep.subr.bf16.mxu0 0
        %1183 = vmatpush1.bf16.msra.mxu0 0
        %1184 = vmatprep.subr.bf16.mxu0 0
        %1185 = vmatpush1.bf16.msra.mxu0 0
        %1186 = vmatprep.subr.bf16.mxu0 0
        %1187 = vmatpush1.bf16.msra.mxu0 0
        %1188 = vmatprep.subr.bf16.mxu0 0
        %1189 = vmatpush1.bf16.msra.mxu0 0
        %1190 = vmatprep.subr.bf16.mxu0 0
        %1191 = vmatpush1.bf16.msra.mxu0 0
        %1192 = vmatprep.subr.bf16.mxu0 0
        %1193 = vmatpush1.bf16.msra.mxu0 0
        %1194 = vmatprep.subr.bf16.mxu0 0
        %1195 = vmatpush1.bf16.msra.mxu0 0
        %1196 = vmatprep.subr.bf16.mxu0 0
        %1197 = vmatpush1.bf16.msra.mxu0 0
        %1198 = vmatprep.subr.bf16.mxu0 0
        %1199 = vmatpush1.bf16.msra.mxu0 0
        %1200 = vmatprep.subr.bf16.mxu0 0
        %1201 = vmatpush1.bf16.msra.mxu0 0
        %1202 = vmatprep.subr.bf16.mxu0 0
        %1203 = vmatpush1.bf16.msra.mxu0 0
        %1204 = vmatprep.subr.bf16.mxu0 0
        %1205 = vmatpush1.bf16.msra.mxu0 0
        %1206 = vmatprep.mubr.bf16.mxu0 0
        %1207 = vmatmul.mubr.bf16.gmra.mrb[0].mxu0 %v1172
        %v1208 = vpop.f32.mrb[0].mxu0
        %v1209 = vadd.f32 %v1157, %v1208
        %v1210 = vpop.f32.mrb[0].mxu0
        %v1211 = vpop.f32.mrb[0].mxu0
        %v1212 = vpop.f32.mrb[0].mxu0
        %1213 = vdwg.mxu0
        %v1214 = vmax.f32 %v1209, 0.0
        %v1215 = vadd.f32 %v1151, %v1214
        %vm1216 = vcmask 257024
        %1217 = vst.msk [vmem:[%s505] sm:$0xf] %vm1216, %v1215
        %s1218 = sand.u32 %s269, 1
        %s1219 = scalar_lea.sflag [#allocation4], %s1218
        %s1220 = sand.u32 %s269, 1
        %s1221 = smul.addr %s1220, 4
        %s1222 = scalar_lea.vmem [#allocation19], %s1221
        // Predicated region
        $region101: #{tpu_custom_call.1} parent=59 // pred_check
          %p1223 = pneg %p279
        $region102: #{tpu_custom_call.1} parent=59 // pred_check_branch
          %1225 = sbr.rel (%p1223) target = $region104
        $region103: #{tpu_custom_call.1} parent=59 // pred_region
          %s1227 = ssub.s32 64, 64
          %1228 = vsyncadd %s1219, %s1227
          %s1229 = sadd.s32 %s37, %s36
          %s1230 = smul.addr %s1229, 64
          %s1231 = scalar_lea.hbm %s10, %s1230
          %s1233 = sshll.u32 %s1222, 4
          %s1234 = int_to_ptr.vmem [resolvable:$true] %s1233
          %1236 = dma.vmem_to_hbm [thread:$0]  %s1234, 64, %s1231, %s1219
        $region104: #{tpu_custom_call.1} parent=59 // pred_fallthru
          _
      $region60: #{tpu_custom_call.1} parent=5 // pred_fallthru
        _
      %p1237 = scmp.le.s32.totalorder 2, %s27
      // Predicated region
      $region105: #{tpu_custom_call.1} parent=5 // pred_check
        %p1238 = pneg %p1237
      $region106: #{tpu_custom_call.1} parent=5 // pred_check_branch
        %1240 = sbr.rel (%p1238) target = $region108
      $region107: #{tpu_custom_call.1} parent=5 // pred_region
        %s1241 = ssub.s32 %s27, 2
        // Predicated region
        $region109: #{tpu_custom_call.1} parent=107 // pred_check
          %p1242 = pneg %p285
        $region110: #{tpu_custom_call.1} parent=107 // pred_check_branch
          %1244 = sbr.rel (%p1242) target = $region112
        $region111: #{tpu_custom_call.1} parent=107 // pred_region
          %s1245 = sand.u32 %s270, 1
          %s1246 = scalar_lea.sflag [#allocation4], %s1245
          %s1247 = sand.u32 %s270, 1
          %s1248 = smul.addr %s1247, 4
          %s1249 = scalar_lea.vmem [#allocation19], %s1248
          %1250 = dma.done %s1246, 64
        $region112: #{tpu_custom_call.1} parent=107 // pred_fallthru
          _
      $region108: #{tpu_custom_call.1} parent=5 // pred_fallthru
        _
    $region6: #{tpu_custom_call.1} parent=1 // loop_footer
      %s31 = sadd.s32 1, %s27
    $region7: #{tpu_custom_call.1} parent=1 // loop_footer_branch
      %26 = sbr.rel target = $region3
    $region8: #{tpu_custom_call.1} parent=1 // loop_exit
      _
    %1251 = vsyncpa [#allocation3], 1
    %s1252 = scalar_lea.sflag [#allocation3], 1
    %1253 = vsyncpa %s1252, 1
    %1254 = vsyncpa [#allocation6], 1
    %s1255 = scalar_lea.sflag [#allocation6], 1
    %1256 = vsyncpa %s1255, 1
    %1257 = vsyncpa [#allocation9], 1
    %1258 = vsyncpa [#allocation12], 1
    %1259 = vsyncpa [#allocation15], 1
    %1260 = vsyncpa [#allocation18], 1
    %1261 = vsyncpa [#allocation4], 1
    %s1262 = scalar_lea.sflag [#allocation4], 1
    %1263 = vsyncpa %s1262, 1

</llo_original>
